<compile_context>
chip_gen: v5e
topology: v5e:2x2
jax: 0.10.0
libtpu: 0.0.40
codegen_flags: <defaults>
</compile_context>

<pallas_src>
import jax
import jax.numpy as jnp
from jax.experimental import pallas as pl
from jax.experimental.pallas import tpu as pltpu

_TILE_N = 2048                      # spatial tile on the lane axis (multiple of 128)
_VMEM_LIMIT = 32 * 1024 * 1024      # explicit budget; safe on v5e/v6e/v7x


def _round_up(x, m):
    return (x + m - 1) // m * m


# ----------------------- glue: channels-first im2col ------------------------

def _im2col_cf_bf16(x_nchw, k_pad):
    """3x3 / stride-2 / pad-1 im2col, channels first, single bf16 materialization.

    Returns ([B, k_pad, Ho*Wo] bf16, Ho, Wo). Column ordering is
    (kh*3 + kw)*Cin + c, matching the weight layout from prepare_params.
    The K zero-pad is folded into the same concat (no second pass).
    """
    B, C, H, W = x_nchw.shape
    K = 9 * C
    assert k_pad >= K
    xp = jnp.pad(x_nchw.astype(jnp.bfloat16), ((0, 0), (0, 0), (1, 1), (1, 1)))
    Ho = (H - 1) // 2 + 1
    Wo = (W - 1) // 2 + 1
    taps = []
    for kh in range(3):
        for kw in range(3):
            taps.append(xp[:, :, kh:kh + 2 * Ho:2, kw:kw + 2 * Wo:2])
    if k_pad > K:
        taps.append(jnp.zeros((B, k_pad - K, Ho, Wo), jnp.bfloat16))
    p = jnp.concatenate(taps, axis=1)                    # [B, k_pad, Ho, Wo]
    return p.reshape(B, k_pad, Ho * Wo), Ho, Wo


def _tile(N, tile_n):
    if N <= tile_n:
        return N, 1                       # single full-extent block (no padding)
    return tile_n, pl.cdiv(N, tile_n)     # partial last block masked by Pallas


# ------------------------------ Pallas kernels -------------------------------

def _conv_bias_relu_kernel(w_ref, b_ref, p_ref, o_ref):
    # relu(W @ patches + b): bf16 [Cout, K_pad] x [K_pad, tn] on the MXU,
    # f32 accumulation; output written lane-dense as bf16 [Cout, tn] (= NCHW).
    acc = jnp.dot(w_ref[...], p_ref[0], preferred_element_type=jnp.float32)
    o_ref[0] = jnp.maximum(acc + b_ref[...], 0.0).astype(o_ref.dtype)


def _moe_conv_bias_relu_kernel(idx_ref, w_ref, b_ref, p_ref, o_ref):
    # Expert routing already happened in the BlockSpec index_maps via the
    # scalar-prefetched idx_ref; it is unused in the body.
    del idx_ref
    acc = jnp.dot(w_ref[0], p_ref[0], preferred_element_type=jnp.float32)
    o_ref[0] = jnp.maximum(acc + b_ref[0], 0.0).astype(o_ref.dtype)


# ------------------------------- conv wrappers -------------------------------

def conv3x3_s2_relu(x_nchw, w_mat, b_col, *, tile_n=_TILE_N):
    """Regular layer: relu(conv3x3(stride=2, pad=1)(x) + b), NCHW -> NCHW bf16.

    w_mat: [Cout, K_pad] bf16 (pre-laid-out), b_col: [Cout, 1] f32.
    """
    B = x_nchw.shape[0]
    Cout, K_pad = w_mat.shape
    patches, Ho, Wo = _im2col_cf_bf16(x_nchw, K_pad)            # [B, K_pad, N] bf16
    N = Ho * Wo
    tn, n_tiles = _tile(N, tile_n)

    cost = pl.CostEstimate(
        flops=2 * B * N * K_pad * Cout,
        transcendentals=0,
        bytes_accessed=(B * K_pad * N * 2 + Cout * K_pad * 2
                        + Cout * 4 + B * Cout * N * 2))
    # TODO(synk): for the tiny deep layers, folding B into the lane axis would
    # make stores fully lane-dense, but needs a [Cout, B*N] -> NCHW transpose.
    # TODO(synk): sweep pipeline_mode=pl.Buffered(3) on the patch spec for v5e.
    out = pl.pallas_call(
        _conv_bias_relu_kernel,
        out_shape=jax.ShapeDtypeStruct((B, Cout, N), jnp.bfloat16),
        grid=(B, n_tiles),
        in_specs=[
            pl.BlockSpec((Cout, K_pad), lambda b, n: (0, 0)),       # weights (resident)
            pl.BlockSpec((Cout, 1), lambda b, n: (0, 0)),           # bias
            pl.BlockSpec((1, K_pad, tn), lambda b, n: (b, 0, n)),   # patch tile
        ],
        out_specs=pl.BlockSpec((1, Cout, tn), lambda b, n: (b, 0, n)),
        compiler_params=pltpu.CompilerParams(
            dimension_semantics=("parallel", "parallel"),
            vmem_limit_bytes=_VMEM_LIMIT),
        cost_estimate=cost,
    )(w_mat, b_col, patches)
    return out.reshape(B, Cout, Ho, Wo)


def moe_conv3x3_s2_relu(x_nchw, w_stack, b_stack, module_indices, *, tile_n=_TILE_N):
    """MoE layer (nn.ModuleList): batch element j runs expert module_indices[j].

    Mirrors IntermediateLayerGetterMoE:
        x = cat([module[b_id](x[j:j+1]) for j, b_id in enumerate(module_indices)])
    Expert selection feeds the weight/bias BlockSpec index_maps via scalar prefetch.
    w_stack: [E, Cout, K_pad] bf16 (pre-laid-out), b_stack: [E, Cout, 1] f32.
    """
    B = x_nchw.shape[0]
    E, Cout, K_pad = w_stack.shape
    patches, Ho, Wo = _im2col_cf_bf16(x_nchw, K_pad)            # [B, K_pad, N] bf16
    N = Ho * Wo
    tn, n_tiles = _tile(N, tile_n)

    # TODO(synk): sorting batch elements by expert id would let Pallas skip
    # re-DMAing expert weights on consecutive steps; negligible at E=2.
    grid_spec = pltpu.PrefetchScalarGridSpec(
        num_scalar_prefetch=1,
        grid=(B, n_tiles),
        in_specs=[
            pl.BlockSpec((1, Cout, K_pad), lambda b, n, idx: (idx[b], 0, 0)),
            pl.BlockSpec((1, Cout, 1), lambda b, n, idx: (idx[b], 0, 0)),
            pl.BlockSpec((1, K_pad, tn), lambda b, n, idx: (b, 0, n)),
        ],
        out_specs=pl.BlockSpec((1, Cout, tn), lambda b, n, idx: (b, 0, n)),
    )
    cost = pl.CostEstimate(
        flops=2 * B * N * K_pad * Cout,
        transcendentals=0,
        bytes_accessed=(B * K_pad * N * 2 + E * Cout * K_pad * 2
                        + E * Cout * 4 + B * Cout * N * 2))
    out = pl.pallas_call(
        _moe_conv_bias_relu_kernel,
        out_shape=jax.ShapeDtypeStruct((B, Cout, N), jnp.bfloat16),
        grid_spec=grid_spec,
        compiler_params=pltpu.CompilerParams(
            dimension_semantics=("parallel", "parallel"),
            vmem_limit_bytes=_VMEM_LIMIT),
        cost_estimate=cost,
    )(module_indices.astype(jnp.int32), w_stack, b_stack, patches)
    return out.reshape(B, Cout, Ho, Wo)


# --------------------------- mask interpolation ------------------------------

def _interpolate_nearest_mask(mask_bool, out_h, out_w):
    """F.interpolate(m[None].float(), size=(h, w)).to(torch.bool)[0] (mode='nearest')."""
    B, H, W = mask_bool.shape
    rows = jnp.floor(jnp.arange(out_h) * (H / out_h)).astype(jnp.int32)
    cols = jnp.floor(jnp.arange(out_w) * (W / out_w)).astype(jnp.int32)
    m = mask_bool.astype(jnp.float32)[:, rows][:, :, cols]
    return m.astype(jnp.bool_)


# -------------------------------- the module ---------------------------------

def init_params(key):
    """Raw (PyTorch-layout) parameters of the synthetic backbone."""
    ks = jax.random.split(key, 8)
    s = 0.1
    return {
        "layer1_w": s * jax.random.normal(ks[0], (8, 3, 3, 3), jnp.float32),
        "layer1_b": s * jax.random.normal(ks[1], (8,), jnp.float32),
        "layer2_w": s * jax.random.normal(ks[2], (16, 8, 3, 3), jnp.float32),
        "layer2_b": s * jax.random.normal(ks[3], (16,), jnp.float32),
        # layer3 is the MoE nn.ModuleList: E = 2 experts
        "layer3_w": s * jax.random.normal(ks[4], (2, 32, 16, 3, 3), jnp.float32),
        "layer3_b": s * jax.random.normal(ks[5], (2, 32), jnp.float32),
        "layer4_w": s * jax.random.normal(ks[6], (64, 32, 3, 3), jnp.float32),
        "layer4_b": s * jax.random.normal(ks[7], (64,), jnp.float32),
    }
    # TODO(synk): requires_grad_ freezing in __init__ is training-time only; no forward effect.


def prepare_params(params):
    """One-time weight layout: [Cout, K_pad] / [E, Cout, K_pad] bf16 + column biases.

    Hoisted out of the forward so no per-call transpose/pad/cast passes remain.
    Column ordering (kh*3 + kw)*Cin + c matches _im2col_cf_bf16.
    """
    def prep_w(w):
        Cout, Cin = w.shape[0], w.shape[1]
        K = 9 * Cin
        Kp = _round_up(K, 16)                                   # bf16 sublane multiple
        wm = w.transpose(0, 2, 3, 1).reshape(Cout, K)
        return jnp.pad(wm, ((0, 0), (0, Kp - K))).astype(jnp.bfloat16)

    def prep_w_moe(w):
        E, Cout, Cin = w.shape[0], w.shape[1], w.shape[2]
        K = 9 * Cin
        Kp = _round_up(K, 16)
        wm = w.transpose(0, 1, 3, 4, 2).reshape(E, Cout, K)
        return jnp.pad(wm, ((0, 0), (0, 0), (0, Kp - K))).astype(jnp.bfloat16)

    return {
        "layer1_w": prep_w(params["layer1_w"]),
        "layer1_b": params["layer1_b"].astype(jnp.float32)[:, None],
        "layer2_w": prep_w(params["layer2_w"]),
        "layer2_b": params["layer2_b"].astype(jnp.float32)[:, None],
        "layer3_w": prep_w_moe(params["layer3_w"]),
        "layer3_b": params["layer3_b"].astype(jnp.float32)[:, :, None],
        "layer4_w": prep_w(params["layer4_w"]),
        "layer4_b": params["layer4_b"].astype(jnp.float32)[:, None],
    }


def backbone_base_moe_forward(prepped, tensors, mask, module_indices):
    """BackboneBaseMoE.forward (return_interm_indices = [1, 2, 3]).

    prepped: output of prepare_params (pre-laid-out bf16 weights).
    tensors: [B, C, H, W] f32 (NestedTensor.tensors, NCHW)
    mask:    [B, H, W] bool   (NestedTensor.mask)
    module_indices: [B] int32 expert ids for the MoE layer.
    Returns dict name -> (features NCHW f32, interpolated bool mask),
    standing in for {name: NestedTensor(x, mask)}.
    Intermediate chain is bf16; returned features are cast to f32 at the
    boundary to preserve the torch f32 interface (bf16-level precision).
    """
    x = conv3x3_s2_relu(tensors, prepped["layer1_w"], prepped["layer1_b"])
    xs = {}
    x = conv3x3_s2_relu(x, prepped["layer2_w"], prepped["layer2_b"])
    xs["1"] = x
    x = moe_conv3x3_s2_relu(x, prepped["layer3_w"], prepped["layer3_b"], module_indices)
    xs["2"] = x
    x = conv3x3_s2_relu(x, prepped["layer4_w"], prepped["layer4_b"])
    xs["3"] = x
    out = {}
    for name, feat in xs.items():
        h, w = feat.shape[-2], feat.shape[-1]
        out[name] = (feat.astype(jnp.float32), _interpolate_nearest_mask(mask, h, w))
    return out


# --------------------------------- reference ---------------------------------

def _ref_conv(x, w, b):
    # Mirrors the kernel numerics: bf16 MXU inputs, f32 accumulation, bf16
    # layer-boundary precision (rounded back to f32 for comparison).
    y = jax.lax.conv_general_dilated(
        x.astype(jnp.bfloat16), w.astype(jnp.bfloat16),
        window_strides=(2, 2), padding=((1, 1), (1, 1)),
        dimension_numbers=("NCHW", "OIHW", "NCHW"),
        preferred_element_type=jnp.float32)
    y = jax.nn.relu(y + b[None, :, None, None])
    return y.astype(jnp.bfloat16).astype(jnp.float32)


def _ref_forward(params, tensors, module_indices):
    x = _ref_conv(tensors, params["layer1_w"], params["layer1_b"])
    x = _ref_conv(x, params["layer2_w"], params["layer2_b"])
    f1 = x
    x = jnp.concatenate(
        [_ref_conv(x[j:j + 1], params["layer3_w"][e], params["layer3_b"][e])
         for j, e in enumerate(module_indices.tolist())], axis=0)
    f2 = x
    x = _ref_conv(x, params["layer4_w"], params["layer4_b"])
    return f1, f2, x


# ----------------------------------- main -------------------------------------

if __name__ == "__main__":
    key = jax.random.PRNGKey(0)
    pkey, xkey = jax.random.split(key)
    params = init_params(pkey)
    prepped = prepare_params(params)   # one-time weight layout (hoisted out of forward)

    B, C, H, W = 2, 3, 32, 32
    tensors = jax.random.normal(xkey, (B, C, H, W), jnp.float32)
    # NestedTensor mask: True = padded pixel; pad right/bottom of image 1.
    mask = jnp.zeros((B, H, W), jnp.bool_)
    mask = mask.at[1, :, 24:].set(True)
    mask = mask.at[1, 24:, :].set(True)
    module_indices = jnp.array([1, 0], dtype=jnp.int32)

    fwd = jax.jit(backbone_base_moe_forward)
    out = fwd(prepped, tensors, mask, module_indices)
    jax.block_until_ready(out)

    # Correctness check against an XLA conv reference with matching numerics
    # (bf16 layer boundaries on both sides; residual diff = accumulation order,
    #  bounded by ~1 bf16 ulp).
    f1, f2, f3 = _ref_forward(params, tensors, module_indices)
    for name, ref in (("1", f1), ("2", f2), ("3", f3)):
        feat, m = out[name]
        err = float(jnp.max(jnp.abs(feat - ref)))
        assert err < 2e-2, (name, err)
        assert feat.shape == ref.shape, (feat.shape, ref.shape)
        assert feat.dtype == jnp.float32
        assert m.shape == (B,) + feat.shape[-2:]
        assert m.dtype == jnp.bool_

    print("KERNEL_OK")
</pallas_src>

<mosaic_0001>
module attributes {stable_mosaic.version = 11 : i64} {
  func.func @_conv_bias_relu_kernel(%arg0: i32, %arg1: i32, %arg2: memref<8x32xbf16, #tpu.memory_space<vmem>>, %arg3: memref<8x1xf32, #tpu.memory_space<vmem>>, %arg4: memref<1x32x256xbf16, #tpu.memory_space<vmem>>, %arg5: memref<1x8x256xbf16, #tpu.memory_space<vmem>>) attributes {dimension_semantics = [#tpu.dimension_semantics<parallel>, #tpu.dimension_semantics<parallel>], iteration_bounds = array<i64: 2, 1>, scalar_prefetch = 0 : i64, scratch_operands = 0 : i64, tpu.core_type = #tpu.core_type<tc>, window_params = [{pipeline_mode = #tpu.pipeline_mode<synchronous>, transform_indices = @transform_0, window_bounds = array<i64: 8, 32>}, {pipeline_mode = #tpu.pipeline_mode<synchronous>, transform_indices = @transform_1, window_bounds = array<i64: 8, 1>}, {transform_indices = @transform_2, window_bounds = array<i64: 1, 32, 256>}, {transform_indices = @transform_3, window_bounds = array<i64: 1, 8, 256>}]} {
    %c0 = arith.constant 0 : index
    %c0_0 = arith.constant 0 : index
    %0 = vector.load %arg2[%c0, %c0_0] : memref<8x32xbf16, #tpu.memory_space<vmem>>, vector<8x32xbf16>
    %c0_1 = arith.constant 0 : index
    %c0_2 = arith.constant 0 : index
    %c0_3 = arith.constant 0 : index
    %1 = vector.load %arg4[%c0_1, %c0_2, %c0_3] : memref<1x32x256xbf16, #tpu.memory_space<vmem>>, vector<1x32x256xbf16>
    %2 = vector.shape_cast %1 : vector<1x32x256xbf16> to vector<32x256xbf16>
    %cst = arith.constant dense<0.000000e+00> : vector<8x256xf32>
    %3 = tpu.matmul %0, %2, %cst {dimension_numbers = #tpu.dot_dimension_numbers<[1], [0], [0], [1], [0, 0, 1, 1], [], []>} : vector<8x32xbf16>, vector<32x256xbf16>, vector<8x256xf32> -> vector<8x256xf32>
    %c0_4 = arith.constant 0 : index
    %c0_5 = arith.constant 0 : index
    %4 = vector.load %arg3[%c0_4, %c0_5] : memref<8x1xf32, #tpu.memory_space<vmem>>, vector<8x1xf32>
    %5 = vector.broadcast %4 : vector<8x1xf32> to vector<8x256xf32>
    %6 = arith.addf %3, %5 : vector<8x256xf32>
    %cst_6 = arith.constant 0.000000e+00 : f32
    %7 = vector.broadcast %cst_6 : f32 to vector<8x256xf32>
    %8 = arith.maximumf %6, %7 : vector<8x256xf32>
    %9 = arith.truncf %8 : vector<8x256xf32> to vector<8x256xbf16>
    %c0_7 = arith.constant 0 : index
    %c0_8 = arith.constant 0 : index
    %c0_9 = arith.constant 0 : index
    %10 = vector.load %arg5[%c0_7, %c0_8, %c0_9] : memref<1x8x256xbf16, #tpu.memory_space<vmem>>, vector<1x8x256xbf16>
    %11 = vector.shape_cast %10 : vector<1x8x256xbf16> to vector<8x256xbf16>
    %12 = vector.shape_cast %9 : vector<8x256xbf16> to vector<1x8x256xbf16>
    tpu.vector_store %arg5[%c0_7, %c0_8, %c0_9], %12 {strides = array<i32>} : memref<1x8x256xbf16, #tpu.memory_space<vmem>>, vector<1x8x256xbf16>,
    return
  }
  func.func @transform_0(%arg0: i32, %arg1: i32) -> (i32, i32) {
    %c0_i32 = arith.constant 0 : i32
    %c0_i32_0 = arith.constant 0 : i32
    %c0_i32_1 = arith.constant 0 : i32
    return %c0_i32, %c0_i32_0 : i32, i32
  }
  func.func @transform_1(%arg0: i32, %arg1: i32) -> (i32, i32) {
    %c0_i32 = arith.constant 0 : i32
    %c0_i32_0 = arith.constant 0 : i32
    %c0_i32_1 = arith.constant 0 : i32
    return %c0_i32, %c0_i32_0 : i32, i32
  }
  func.func @transform_2(%arg0: i32, %arg1: i32) -> (i32, i32, i32) {
    %c0_i32 = arith.constant 0 : i32
    %c0_i32_0 = arith.constant 0 : i32
    return %arg0, %c0_i32, %arg1 : i32, i32, i32
  }
  func.func @transform_3(%arg0: i32, %arg1: i32) -> (i32, i32, i32) {
    %c0_i32 = arith.constant 0 : i32
    %c0_i32_0 = arith.constant 0 : i32
    return %arg0, %c0_i32, %arg1 : i32, i32, i32
  }
}

module attributes {stable_mosaic.version = 11 : i64} {
  func.func @_conv_bias_relu_kernel(%arg0: i32, %arg1: i32, %arg2: memref<16x80xbf16, #tpu.memory_space<vmem>>, %arg3: memref<16x1xf32, #tpu.memory_space<vmem>>, %arg4: memref<1x80x64xbf16, #tpu.memory_space<vmem>>, %arg5: memref<1x16x64xbf16, #tpu.memory_space<vmem>>) attributes {dimension_semantics = [#tpu.dimension_semantics<parallel>, #tpu.dimension_semantics<parallel>], iteration_bounds = array<i64: 2, 1>, scalar_prefetch = 0 : i64, scratch_operands = 0 : i64, tpu.core_type = #tpu.core_type<tc>, window_params = [{pipeline_mode = #tpu.pipeline_mode<synchronous>, transform_indices = @transform_0, window_bounds = array<i64: 16, 80>}, {pipeline_mode = #tpu.pipeline_mode<synchronous>, transform_indices = @transform_1, window_bounds = array<i64: 16, 1>}, {transform_indices = @transform_2, window_bounds = array<i64: 1, 80, 64>}, {transform_indices = @transform_3, window_bounds = array<i64: 1, 16, 64>}]} {
    %c0 = arith.constant 0 : index
    %c0_0 = arith.constant 0 : index
    %0 = vector.load %arg2[%c0, %c0_0] : memref<16x80xbf16, #tpu.memory_space<vmem>>, vector<16x80xbf16>
    %c0_1 = arith.constant 0 : index
    %c0_2 = arith.constant 0 : index
    %c0_3 = arith.constant 0 : index
    %1 = vector.load %arg4[%c0_1, %c0_2, %c0_3] : memref<1x80x64xbf16, #tpu.memory_space<vmem>>, vector<1x80x64xbf16>
    %2 = vector.shape_cast %1 : vector<1x80x64xbf16> to vector<80x64xbf16>
    %cst = arith.constant dense<0.000000e+00> : vector<16x64xf32>
    %3 = tpu.matmul %0, %2, %cst {dimension_numbers = #tpu.dot_dimension_numbers<[1], [0], [0], [1], [0, 0, 1, 1], [], []>} : vector<16x80xbf16>, vector<80x64xbf16>, vector<16x64xf32> -> vector<16x64xf32>
    %c0_4 = arith.constant 0 : index
    %c0_5 = arith.constant 0 : index
    %4 = vector.load %arg3[%c0_4, %c0_5] : memref<16x1xf32, #tpu.memory_space<vmem>>, vector<16x1xf32>
    %5 = vector.broadcast %4 : vector<16x1xf32> to vector<16x64xf32>
    %6 = arith.addf %3, %5 : vector<16x64xf32>
    %cst_6 = arith.constant 0.000000e+00 : f32
    %7 = vector.broadcast %cst_6 : f32 to vector<16x64xf32>
    %8 = arith.maximumf %6, %7 : vector<16x64xf32>
    %9 = arith.truncf %8 : vector<16x64xf32> to vector<16x64xbf16>
    %c0_7 = arith.constant 0 : index
    %c0_8 = arith.constant 0 : index
    %c0_9 = arith.constant 0 : index
    %10 = vector.load %arg5[%c0_7, %c0_8, %c0_9] : memref<1x16x64xbf16, #tpu.memory_space<vmem>>, vector<1x16x64xbf16>
    %11 = vector.shape_cast %10 : vector<1x16x64xbf16> to vector<16x64xbf16>
    %12 = vector.shape_cast %9 : vector<16x64xbf16> to vector<1x16x64xbf16>
    tpu.vector_store %arg5[%c0_7, %c0_8, %c0_9], %12 {strides = array<i32>} : memref<1x16x64xbf16, #tpu.memory_space<vmem>>, vector<1x16x64xbf16>,
    return
  }
  func.func @transform_0(%arg0: i32, %arg1: i32) -> (i32, i32) {
    %c0_i32 = arith.constant 0 : i32
    %c0_i32_0 = arith.constant 0 : i32
    %c0_i32_1 = arith.constant 0 : i32
    return %c0_i32, %c0_i32_0 : i32, i32
  }
  func.func @transform_1(%arg0: i32, %arg1: i32) -> (i32, i32) {
    %c0_i32 = arith.constant 0 : i32
    %c0_i32_0 = arith.constant 0 : i32
    %c0_i32_1 = arith.constant 0 : i32
    return %c0_i32, %c0_i32_0 : i32, i32
  }
  func.func @transform_2(%arg0: i32, %arg1: i32) -> (i32, i32, i32) {
    %c0_i32 = arith.constant 0 : i32
    %c0_i32_0 = arith.constant 0 : i32
    return %arg0, %c0_i32, %arg1 : i32, i32, i32
  }
  func.func @transform_3(%arg0: i32, %arg1: i32) -> (i32, i32, i32) {
    %c0_i32 = arith.constant 0 : i32
    %c0_i32_0 = arith.constant 0 : i32
    return %arg0, %c0_i32, %arg1 : i32, i32, i32
  }
}

module attributes {stable_mosaic.version = 11 : i64} {
  func.func @_moe_conv_bias_relu_kernel(%arg0: i32, %arg1: i32, %arg2: memref<2xi32, #tpu.memory_space<smem>>, %arg3: memref<1x32x144xbf16, #tpu.memory_space<vmem>>, %arg4: memref<1x32x1xf32, #tpu.memory_space<vmem>>, %arg5: memref<1x144x16xbf16, #tpu.memory_space<vmem>>, %arg6: memref<1x32x16xbf16, #tpu.memory_space<vmem>>) attributes {dimension_semantics = [#tpu.dimension_semantics<parallel>, #tpu.dimension_semantics<parallel>], iteration_bounds = array<i64: 2, 1>, scalar_prefetch = 1 : i64, scratch_operands = 0 : i64, tpu.core_type = #tpu.core_type<tc>, window_params = [{transform_indices = @transform_0, window_bounds = array<i64: 1, 32, 144>}, {transform_indices = @transform_1, window_bounds = array<i64: 1, 32, 1>}, {transform_indices = @transform_2, window_bounds = array<i64: 1, 144, 16>}, {transform_indices = @transform_3, window_bounds = array<i64: 1, 32, 16>}]} {
    %c0 = arith.constant 0 : index
    %c0_0 = arith.constant 0 : index
    %c0_1 = arith.constant 0 : index
    %0 = vector.load %arg3[%c0, %c0_0, %c0_1] : memref<1x32x144xbf16, #tpu.memory_space<vmem>>, vector<1x32x144xbf16>
    %1 = vector.shape_cast %0 : vector<1x32x144xbf16> to vector<32x144xbf16>
    %c0_2 = arith.constant 0 : index
    %c0_3 = arith.constant 0 : index
    %c0_4 = arith.constant 0 : index
    %2 = vector.load %arg5[%c0_2, %c0_3, %c0_4] : memref<1x144x16xbf16, #tpu.memory_space<vmem>>, vector<1x144x16xbf16>
    %3 = vector.shape_cast %2 : vector<1x144x16xbf16> to vector<144x16xbf16>
    %cst = arith.constant dense<0.000000e+00> : vector<32x16xf32>
    %4 = tpu.matmul %1, %3, %cst {dimension_numbers = #tpu.dot_dimension_numbers<[1], [0], [0], [1], [0, 0, 1, 1], [], []>} : vector<32x144xbf16>, vector<144x16xbf16>, vector<32x16xf32> -> vector<32x16xf32>
    %c0_5 = arith.constant 0 : index
    %c0_6 = arith.constant 0 : index
    %c0_7 = arith.constant 0 : index
    %5 = vector.load %arg4[%c0_5, %c0_6, %c0_7] : memref<1x32x1xf32, #tpu.memory_space<vmem>>, vector<1x32x1xf32>
    %6 = vector.shape_cast %5 : vector<1x32x1xf32> to vector<32x1xf32>
    %7 = vector.broadcast %6 : vector<32x1xf32> to vector<32x16xf32>
    %8 = arith.addf %4, %7 : vector<32x16xf32>
    %cst_8 = arith.constant 0.000000e+00 : f32
    %9 = vector.broadcast %cst_8 : f32 to vector<32x16xf32>
    %10 = arith.maximumf %8, %9 : vector<32x16xf32>
    %11 = arith.truncf %10 : vector<32x16xf32> to vector<32x16xbf16>
    %c0_9 = arith.constant 0 : index
    %c0_10 = arith.constant 0 : index
    %c0_11 = arith.constant 0 : index
    %12 = vector.load %arg6[%c0_9, %c0_10, %c0_11] : memref<1x32x16xbf16, #tpu.memory_space<vmem>>, vector<1x32x16xbf16>
    %13 = vector.shape_cast %12 : vector<1x32x16xbf16> to vector<32x16xbf16>
    %14 = vector.shape_cast %11 : vector<32x16xbf16> to vector<1x32x16xbf16>
    tpu.vector_store %arg6[%c0_9, %c0_10, %c0_11], %14 {strides = array<i32>} : memref<1x32x16xbf16, #tpu.memory_space<vmem>>, vector<1x32x16xbf16>,
    return
  }
  func.func @transform_0(%arg0: i32, %arg1: i32, %arg2: memref<2xi32, #tpu.memory_space<smem>>) -> (i32, i32, i32) {
    %0 = arith.index_cast %arg0 : i32 to index
    %1 = memref.load %arg2[%0] : memref<2xi32, #tpu.memory_space<smem>>
    %c0_i32 = arith.constant 0 : i32
    %c0_i32_0 = arith.constant 0 : i32
    %c0_i32_1 = arith.constant 0 : i32
    return %1, %c0_i32, %c0_i32_0 : i32, i32, i32
  }
  func.func @transform_1(%arg0: i32, %arg1: i32, %arg2: memref<2xi32, #tpu.memory_space<smem>>) -> (i32, i32, i32) {
    %0 = arith.index_cast %arg0 : i32 to index
    %1 = memref.load %arg2[%0] : memref<2xi32, #tpu.memory_space<smem>>
    %c0_i32 = arith.constant 0 : i32
    %c0_i32_0 = arith.constant 0 : i32
    %c0_i32_1 = arith.constant 0 : i32
    return %1, %c0_i32, %c0_i32_0 : i32, i32, i32
  }
  func.func @transform_2(%arg0: i32, %arg1: i32, %arg2: memref<2xi32, #tpu.memory_space<smem>>) -> (i32, i32, i32) {
    %c0_i32 = arith.constant 0 : i32
    %c0_i32_0 = arith.constant 0 : i32
    return %arg0, %c0_i32, %arg1 : i32, i32, i32
  }
  func.func @transform_3(%arg0: i32, %arg1: i32, %arg2: memref<2xi32, #tpu.memory_space<smem>>) -> (i32, i32, i32) {
    %c0_i32 = arith.constant 0 : i32
    %c0_i32_0 = arith.constant 0 : i32
    return %arg0, %c0_i32, %arg1 : i32, i32, i32
  }
}

module attributes {stable_mosaic.version = 11 : i64} {
  func.func @_conv_bias_relu_kernel(%arg0: i32, %arg1: i32, %arg2: memref<64x288xbf16, #tpu.memory_space<vmem>>, %arg3: memref<64x1xf32, #tpu.memory_space<vmem>>, %arg4: memref<1x288x4xbf16, #tpu.memory_space<vmem>>, %arg5: memref<1x64x4xbf16, #tpu.memory_space<vmem>>) attributes {dimension_semantics = [#tpu.dimension_semantics<parallel>, #tpu.dimension_semantics<parallel>], iteration_bounds = array<i64: 2, 1>, scalar_prefetch = 0 : i64, scratch_operands = 0 : i64, tpu.core_type = #tpu.core_type<tc>, window_params = [{pipeline_mode = #tpu.pipeline_mode<synchronous>, transform_indices = @transform_0, window_bounds = array<i64: 64, 288>}, {pipeline_mode = #tpu.pipeline_mode<synchronous>, transform_indices = @transform_1, window_bounds = array<i64: 64, 1>}, {transform_indices = @transform_2, window_bounds = array<i64: 1, 288, 4>}, {transform_indices = @transform_3, window_bounds = array<i64: 1, 64, 4>}]} {
    %c0 = arith.constant 0 : index
    %c0_0 = arith.constant 0 : index
    %0 = vector.load %arg2[%c0, %c0_0] : memref<64x288xbf16, #tpu.memory_space<vmem>>, vector<64x288xbf16>
    %c0_1 = arith.constant 0 : index
    %c0_2 = arith.constant 0 : index
    %c0_3 = arith.constant 0 : index
    %1 = vector.load %arg4[%c0_1, %c0_2, %c0_3] : memref<1x288x4xbf16, #tpu.memory_space<vmem>>, vector<1x288x4xbf16>
    %2 = vector.shape_cast %1 : vector<1x288x4xbf16> to vector<288x4xbf16>
    %cst = arith.constant dense<0.000000e+00> : vector<64x4xf32>
    %3 = tpu.matmul %0, %2, %cst {dimension_numbers = #tpu.dot_dimension_numbers<[1], [0], [0], [1], [0, 0, 1, 1], [], []>} : vector<64x288xbf16>, vector<288x4xbf16>, vector<64x4xf32> -> vector<64x4xf32>
    %c0_4 = arith.constant 0 : index
    %c0_5 = arith.constant 0 : index
    %4 = vector.load %arg3[%c0_4, %c0_5] : memref<64x1xf32, #tpu.memory_space<vmem>>, vector<64x1xf32>
    %5 = vector.broadcast %4 : vector<64x1xf32> to vector<64x4xf32>
    %6 = arith.addf %3, %5 : vector<64x4xf32>
    %cst_6 = arith.constant 0.000000e+00 : f32
    %7 = vector.broadcast %cst_6 : f32 to vector<64x4xf32>
    %8 = arith.maximumf %6, %7 : vector<64x4xf32>
    %9 = arith.truncf %8 : vector<64x4xf32> to vector<64x4xbf16>
    %c0_7 = arith.constant 0 : index
    %c0_8 = arith.constant 0 : index
    %c0_9 = arith.constant 0 : index
    %10 = vector.load %arg5[%c0_7, %c0_8, %c0_9] : memref<1x64x4xbf16, #tpu.memory_space<vmem>>, vector<1x64x4xbf16>
    %11 = vector.shape_cast %10 : vector<1x64x4xbf16> to vector<64x4xbf16>
    %12 = vector.shape_cast %9 : vector<64x4xbf16> to vector<1x64x4xbf16>
    tpu.vector_store %arg5[%c0_7, %c0_8, %c0_9], %12 {strides = array<i32>} : memref<1x64x4xbf16, #tpu.memory_space<vmem>>, vector<1x64x4xbf16>,
    return
  }
  func.func @transform_0(%arg0: i32, %arg1: i32) -> (i32, i32) {
    %c0_i32 = arith.constant 0 : i32
    %c0_i32_0 = arith.constant 0 : i32
    %c0_i32_1 = arith.constant 0 : i32
    return %c0_i32, %c0_i32_0 : i32, i32
  }
  func.func @transform_1(%arg0: i32, %arg1: i32) -> (i32, i32) {
    %c0_i32 = arith.constant 0 : i32
    %c0_i32_0 = arith.constant 0 : i32
    %c0_i32_1 = arith.constant 0 : i32
    return %c0_i32, %c0_i32_0 : i32, i32
  }
  func.func @transform_2(%arg0: i32, %arg1: i32) -> (i32, i32, i32) {
    %c0_i32 = arith.constant 0 : i32
    %c0_i32_0 = arith.constant 0 : i32
    return %arg0, %c0_i32, %arg1 : i32, i32, i32
  }
  func.func @transform_3(%arg0: i32, %arg1: i32) -> (i32, i32, i32) {
    %c0_i32 = arith.constant 0 : i32
    %c0_i32_0 = arith.constant 0 : i32
    return %arg0, %c0_i32, %arg1 : i32, i32, i32
  }
}

</mosaic_0001>

<llo_original>
// kernel: backbone_base_moe_forward.4
$region0: #{backbone_base_moe_forward.4}
  #allocation0 [shape = 'u32[]', space=smem, size = 0x4, offset = 0x4, fixed_abs, tag = 'smem constant byte address 0x4 - core index']
  #allocation1 [shape = 'u32[72,128]{1,0:T(1,128)}', space=vmem, size = 0x9000, scoped, tag = 'internal scratch']
  %s0 = inlined_call_operand.vmem [shape: bf16[8,32], index: 0, kind: input, shape index: {}]
  %s1 = inlined_call_operand.vmem [shape: f32[8,1], index: 1, kind: input, shape index: {}]
  %s2 = inlined_call_operand.vmem [shape: bf16[2,32,256], index: 2, kind: input, shape index: {}]
  %s3 = inlined_call_operand.vmem [shape: bf16[2,8,256], index: 3, kind: output, shape index: {}]
  %s4 = sld [smem:[#allocation0]]
  $region45: #{backbone_base_moe_forward.4} parent=0
    _
  %s6 = ssub.s32 1, %s4
  %s7 = scalar_select 0, %s6, %s4
  loop: start=0, step=1, limit=4
  $region2: #{backbone_base_moe_forward.4} parent=0 // loop_pre_header
    _
  $region3: #{backbone_base_moe_forward.4} parent=0 // loop_header
    %s9 = sphi 0, %s13
    %p10 = scmp.ge.s32.totalorder %s9, 4
    %s16 = sphi 0, %s28
    %s17 = sphi 0, %s24
    %s18 = sphi 0, %s16
    %s19 = sphi 0, %s17
    %s20 = sphi 0, %s18
    %s21 = sphi 0, %s19
    %s29 = sphi 0, %s29
    %s31 = sphi 0, %s29
    %s32 = sphi 0, %s31
    %s46 = sphi 0, %s32
    %s50 = sphi 0, %s50
    %s52 = sphi 0, %s50
    %s53 = sphi 0, %s52
    %s67 = sphi 0, %s53
    %s75 = sphi 0, %s77
    %s78 = sphi 0, %s75
    %s79 = sphi 0, %s78
    %s95 = sphi 0, %s79
    %s103 = sphi 0, %s105
    %s106 = sphi 0, %s103
    %s107 = sphi 0, %s106
    %s123 = sphi 0, %s107
  $region4: #{backbone_base_moe_forward.4} parent=0 // loop_header_branch
    %12 = sbr.rel (%p10) target = $region8
  $region5: #{backbone_base_moe_forward.4} parent=0 // loop_body
    %s14 = ssub.s32 %s9, 1
    %s15 = ssub.s32 %s9, 2
    %s22 = sadd.s32 1, %s17
    %p23 = scmp.ge.s32.totalorder %s22, 1
    %s24 = scalar_select %p23, 0, %s22
    %s25 = sadd.s32 1, %s16
    %s26 = scalar_select %p23, %s25, %s16
    %p27 = scmp.ge.s32.totalorder %s26, 2
    %s28 = scalar_select %p27, 0, %s26
    %s30 = sadd.s32 %s29, 1
    %p33 = scmp.eq.s32.totalorder %s9, 1
    %p34 = scmp.ne.s32.totalorder %s29, %s31
    %p35 = scmp.eq.s32.totalorder %s9, 0
    %p36 = por %p34, %p35
    %p37 = scmp.ne.s32.totalorder %s29, %s31
    %p38 = scmp.eq.s32.totalorder %s14, 1
    %p39 = por %p37, %p38
    %p40 = scmp.ne.s32.totalorder %s31, %s32
    %p41 = scmp.eq.s32.totalorder %s14, 0
    %p42 = por %p40, %p41
    %p43 = scmp.ne.s32.totalorder %s31, %s32
    %p44 = scmp.eq.s32.totalorder %s15, 1
    %p45 = por %p43, %p44
    %p47 = scmp.ne.s32.totalorder %s32, %s46
    %p48 = scmp.eq.s32.totalorder %s15, 0
    %p49 = por %p47, %p48
    %s51 = sadd.s32 %s50, 1
    %p54 = scmp.eq.s32.totalorder %s9, 1
    %p55 = scmp.ne.s32.totalorder %s50, %s52
    %p56 = scmp.eq.s32.totalorder %s9, 0
    %p57 = por %p55, %p56
    %p58 = scmp.ne.s32.totalorder %s50, %s52
    %p59 = scmp.eq.s32.totalorder %s14, 1
    %p60 = por %p58, %p59
    %p61 = scmp.ne.s32.totalorder %s52, %s53
    %p62 = scmp.eq.s32.totalorder %s14, 0
    %p63 = por %p61, %p62
    %p64 = scmp.ne.s32.totalorder %s52, %s53
    %p65 = scmp.eq.s32.totalorder %s15, 1
    %p66 = por %p64, %p65
    %p68 = scmp.ne.s32.totalorder %s53, %s67
    %p69 = scmp.eq.s32.totalorder %s15, 0
    %p70 = por %p68, %p69
    %s71 = ssub.s32 %s16, %s28
    %s72 = ssub.s32 %s17, %s24
    %s73 = sor.u32 %s71, %s72
    %p74 = scmp.eq.s32.totalorder %s73, 0
    %s76 = sadd.s32 %s75, 1
    %s77 = scalar_select %p74, %s75, %s76
    %p80 = pneg %p74
    %p81 = scmp.eq.s32.totalorder %s9, 1
    %p82 = por %p80, %p81
    %p83 = scmp.ne.s32.totalorder %s75, %s78
    %p84 = scmp.eq.s32.totalorder %s9, 0
    %p85 = por %p83, %p84
    %p86 = scmp.ne.s32.totalorder %s75, %s78
    %p87 = scmp.eq.s32.totalorder %s14, 1
    %p88 = por %p86, %p87
    %p89 = scmp.ne.s32.totalorder %s78, %s79
    %p90 = scmp.eq.s32.totalorder %s14, 0
    %p91 = por %p89, %p90
    %p92 = scmp.ne.s32.totalorder %s78, %s79
    %p93 = scmp.eq.s32.totalorder %s15, 1
    %p94 = por %p92, %p93
    %p96 = scmp.ne.s32.totalorder %s79, %s95
    %p97 = scmp.eq.s32.totalorder %s15, 0
    %p98 = por %p96, %p97
    %s99 = ssub.s32 %s16, %s28
    %s100 = ssub.s32 %s17, %s24
    %s101 = sor.u32 %s99, %s100
    %p102 = scmp.eq.s32.totalorder %s101, 0
    %s104 = sadd.s32 %s103, 1
    %s105 = scalar_select %p102, %s103, %s104
    %p108 = pneg %p102
    %p109 = scmp.eq.s32.totalorder %s9, 1
    %p110 = por %p108, %p109
    %p111 = scmp.ne.s32.totalorder %s103, %s106
    %p112 = scmp.eq.s32.totalorder %s9, 0
    %p113 = por %p111, %p112
    %p114 = scmp.ne.s32.totalorder %s103, %s106
    %p115 = scmp.eq.s32.totalorder %s14, 1
    %p116 = por %p114, %p115
    %p117 = scmp.ne.s32.totalorder %s106, %s107
    %p118 = scmp.eq.s32.totalorder %s14, 0
    %p119 = por %p117, %p118
    %p120 = scmp.ne.s32.totalorder %s106, %s107
    %p121 = scmp.eq.s32.totalorder %s15, 1
    %p122 = por %p120, %p121
    %p124 = scmp.ne.s32.totalorder %s107, %s123
    %p125 = scmp.eq.s32.totalorder %s15, 0
    %p126 = por %p124, %p125
    %p127 = scmp.le.s32.totalorder 1, %s9
    %p128 = scmp.lt.s32.totalorder %s9, 3
    %p129 = pnand %p127, %p128
    %p130 = pneg %p129
    // Predicated region
    $region9: #{backbone_base_moe_forward.4} parent=5 // pred_check
      _
    $region10: #{backbone_base_moe_forward.4} parent=5 // pred_check_branch
      %132 = sbr.rel (%p129) target = $region12
    $region11: #{backbone_base_moe_forward.4} parent=5 // pred_region
      %s133 = ssub.s32 %s9, 1
      // Predicated region
      $region13: #{backbone_base_moe_forward.4} parent=11 // pred_check
        %p134 = pneg %p42
      $region14: #{backbone_base_moe_forward.4} parent=11 // pred_check_branch
        %136 = sbr.rel (%p134) target = $region16
      $region15: #{backbone_base_moe_forward.4} parent=11 // pred_region
        _
      $region16: #{backbone_base_moe_forward.4} parent=11 // pred_fallthru
        _
      // Predicated region
      $region17: #{backbone_base_moe_forward.4} parent=11 // pred_check
        %p137 = pneg %p63
      $region18: #{backbone_base_moe_forward.4} parent=11 // pred_check_branch
        %139 = sbr.rel (%p137) target = $region20
      $region19: #{backbone_base_moe_forward.4} parent=11 // pred_region
        _
      $region20: #{backbone_base_moe_forward.4} parent=11 // pred_fallthru
        _
    $region12: #{backbone_base_moe_forward.4} parent=5 // pred_fallthru
      _
    %p140 = scmp.lt.s32.totalorder %s9, 2
    // Predicated region
    $region21: #{backbone_base_moe_forward.4} parent=5 // pred_check
      %p141 = pneg %p140
    $region22: #{backbone_base_moe_forward.4} parent=5 // pred_check_branch
      %143 = sbr.rel (%p141) target = $region24
    $region23: #{backbone_base_moe_forward.4} parent=5 // pred_region
      // Predicated region
      $region25: #{backbone_base_moe_forward.4} parent=23 // pred_check
        %p144 = pneg %p85
      $region26: #{backbone_base_moe_forward.4} parent=23 // pred_check_branch
        %146 = sbr.rel (%p144) target = $region28
      $region27: #{backbone_base_moe_forward.4} parent=23 // pred_region
        %s147 = smul.u32 2, %s17
        %p148 = scmp.lt.s32.totalorder %s16, 1
        %s149 = scalar_select %p148, %s16, 1
        %p150 = scmp.lt.s32.totalorder %s147, 1
        %s151 = scalar_select %p150, %s147, 1
        %s152 = smul.addr %s149, 8
        %s153 = sadd.s32 %s151, %s152
        %s154 = smul.addr %s153, 4
        %s155 = scalar_lea.vmem %s2, %s154
        %s156 = smul.u32 2, %s17
      $region28: #{backbone_base_moe_forward.4} parent=23 // pred_fallthru
        _
    $region24: #{backbone_base_moe_forward.4} parent=5 // pred_fallthru
      _
    %p157 = scmp.le.s32.totalorder 1, %s9
    %p158 = scmp.lt.s32.totalorder %s9, 3
    %p159 = pnand %p157, %p158
    %p160 = pneg %p159
    // Predicated region
    $region29: #{backbone_base_moe_forward.4} parent=5 // pred_check
      _
    $region30: #{backbone_base_moe_forward.4} parent=5 // pred_check_branch
      %162 = sbr.rel (%p159) target = $region32
    $region31: #{backbone_base_moe_forward.4} parent=5 // pred_region
      %s163 = ssub.s32 %s9, 1
      %p164 = pneg %p42
      %p165 = pneg %p39
      %p166 = pneg %p63
      %p167 = pneg %p60
      %s168 = smul.u32 2, %s19
      %p169 = scmp.lt.s32.totalorder %s18, 1
      %s170 = scalar_select %p169, %s18, 1
      %p171 = scmp.lt.s32.totalorder %s168, 1
      %s172 = scalar_select %p171, %s168, 1
      %s173 = smul.addr %s170, 8
      %s174 = sadd.s32 %s172, %s173
      %s175 = smul.addr %s174, 4
      %s176 = scalar_lea.vmem %s2, %s175
      %p177 = pneg %p91
      %p178 = pneg %p88
      %p179 = pneg %p119
      %p180 = pneg %p116
      %s181 = smul.u32 2, %s19
      %p182 = scmp.lt.s32.totalorder %s18, 1
      %s183 = scalar_select %p182, %s18, 1
      %p184 = scmp.lt.s32.totalorder %s181, 1
      %s185 = scalar_select %p184, %s181, 1
      %s186 = smul.addr %s183, 2
      %s187 = sadd.s32 %s185, %s186
      %s188 = smul.addr %s187, 4
      %s189 = scalar_lea.vmem %s3, %s188
      %s190 = smul.u32 2, %s19
      %p191 = scmp.lt.s32.totalorder %s18, 1
      %s192 = scalar_select %p191, %s18, 1
      %p193 = scmp.lt.s32.totalorder %s190, 1
      %s194 = scalar_select %p193, %s190, 1
      %s195 = smul.addr %s192, 8
      %s196 = sadd.s32 %s194, %s195
      %s197 = smul.addr %s196, 4
      %s198 = scalar_lea.vmem %s2, %s197
      %s199 = smul.u32 2, %s19
      %s200 = smul.u32 2, %s19
      %p201 = scmp.lt.s32.totalorder %s18, 1
      %s202 = scalar_select %p201, %s18, 1
      %p203 = scmp.lt.s32.totalorder %s200, 1
      %s204 = scalar_select %p203, %s200, 1
      %s205 = smul.addr %s202, 2
      %s206 = sadd.s32 %s204, %s205
      %s207 = smul.addr %s206, 4
      %s208 = scalar_lea.vmem %s3, %s207
      %s209 = smul.u32 2, %s19
      %v211 = vld [vmem:[%s0] sm:$0xf]
      %v212 = vld [vmem:[%s198] sm:$0xff]
      %v213 = vld [vmem:[%s198 + $0x8] sm:$0xff]
      %v214 = vld [vmem:[%s198 + $0x10] sm:$0xff]
      %v215 = vld [vmem:[%s198 + $0x18] sm:$0xff]
      %v216 = vld [vmem:[%s1] sm:$0xff]
      %218 = vset.pattern.permute.xlu0 0
      %219 = vperm.xlu0 %218, %v216
      %v220 = vpop.permute.xlu0 %219
      %v226 = vunpack.c.l.b16 %v212
      %v227 = vunpack.c.h.b16 %v212
      %v228 = vunpack.c.l.b16 %v213
      %v229 = vunpack.c.h.b16 %v213
      %v230 = vunpack.c.l.b16 %v214
      %v231 = vunpack.c.h.b16 %v214
      %v232 = vunpack.c.l.b16 %v215
      %v233 = vunpack.c.h.b16 %v215
      %v234 = vpack.c.b16 %v228, %v226
      %v235 = vpack.c.b16 %v229, %v227
      %v236 = vpack.c.b16 %v232, %v230
      %v237 = vpack.c.b16 %v233, %v231
      %vm242 = vcmask 261120
      %v244 = vsel %vm242, %v211, 0
      %246 = vmatpush.bf16.msra.mxu0 0
      %247 = vmatpush.bf16.msra.mxu0 0
      %248 = vmatpush.bf16.msra.mxu0 0
      %249 = vmatpush.bf16.msra.mxu0 0
      %250 = vmatpush.bf16.msra.mxu0 0
      %251 = vmatpush.bf16.msra.mxu0 0
      %252 = vmatpush.bf16.msra.mxu0 %v236
      %253 = vmatpush.bf16.msra.mxu0 %v234
      %254 = vmatmul.bf16.gmra.mxu0 %v244
      %v255 = vpop.f32.mrf.mxu0
      %v256 = vadd.f32 %v220, %v255
      %v257 = vpop.f32.mrf.mxu0
      %258 = vdwg.mxu0
      %259 = vmatpush.bf16.msra.mxu0 0
      %260 = vmatpush.bf16.msra.mxu0 0
      %261 = vmatpush.bf16.msra.mxu0 0
      %262 = vmatpush.bf16.msra.mxu0 0
      %263 = vmatpush.bf16.msra.mxu0 0
      %264 = vmatpush.bf16.msra.mxu0 0
      %265 = vmatpush.bf16.msra.mxu0 %v237
      %266 = vmatpush.bf16.msra.mxu0 %v235
      %267 = vmatmul.bf16.gmra.mxu0 %v244
      %v268 = vpop.f32.mrf.mxu0
      %v269 = vadd.f32 %v220, %v268
      %v270 = vpop.f32.mrf.mxu0
      %271 = vdwg.mxu0
      %v272 = vmax.f32 %v256, 0.0
      %v273 = vmax.f32 %v269, 0.0
      %v274 = vpack.c.bf16 %v273, %v272
      %275 = vst [vmem:[%s208] sm:$0xff] %v274
      %s276 = smul.u32 2, %s19
      %p277 = scmp.lt.s32.totalorder %s18, 1
      %s278 = scalar_select %p277, %s18, 1
      %p279 = scmp.lt.s32.totalorder %s276, 1
      %s280 = scalar_select %p279, %s276, 1
      %s281 = smul.addr %s278, 2
      %s282 = sadd.s32 %s280, %s281
      %s283 = smul.addr %s282, 4
      %s284 = scalar_lea.vmem %s3, %s283
      // Predicated region
      $region33: #{backbone_base_moe_forward.4} parent=31 // pred_check
        %p285 = pneg %p116
      $region34: #{backbone_base_moe_forward.4} parent=31 // pred_check_branch
        %287 = sbr.rel (%p285) target = $region36
      $region35: #{backbone_base_moe_forward.4} parent=31 // pred_region
        %s288 = smul.u32 2, %s19
      $region36: #{backbone_base_moe_forward.4} parent=31 // pred_fallthru
        _
    $region32: #{backbone_base_moe_forward.4} parent=5 // pred_fallthru
      _
    %p289 = scmp.le.s32.totalorder 2, %s9
    // Predicated region
    $region37: #{backbone_base_moe_forward.4} parent=5 // pred_check
      %p290 = pneg %p289
    $region38: #{backbone_base_moe_forward.4} parent=5 // pred_check_branch
      %292 = sbr.rel (%p290) target = $region40
    $region39: #{backbone_base_moe_forward.4} parent=5 // pred_region
      %s293 = ssub.s32 %s9, 2
      // Predicated region
      $region41: #{backbone_base_moe_forward.4} parent=39 // pred_check
        %p294 = pneg %p122
      $region42: #{backbone_base_moe_forward.4} parent=39 // pred_check_branch
        %296 = sbr.rel (%p294) target = $region44
      $region43: #{backbone_base_moe_forward.4} parent=39 // pred_region
        %s297 = smul.u32 2, %s21
        %p298 = scmp.lt.s32.totalorder %s20, 1
        %s299 = scalar_select %p298, %s20, 1
        %p300 = scmp.lt.s32.totalorder %s297, 1
        %s301 = scalar_select %p300, %s297, 1
        %s302 = smul.addr %s299, 2
        %s303 = sadd.s32 %s301, %s302
        %s304 = smul.addr %s303, 4
        %s305 = scalar_lea.vmem %s3, %s304
      $region44: #{backbone_base_moe_forward.4} parent=39 // pred_fallthru
        _
    $region40: #{backbone_base_moe_forward.4} parent=5 // pred_fallthru
      _
  $region6: #{backbone_base_moe_forward.4} parent=0 // loop_footer
    %s13 = sadd.s32 1, %s9
  $region7: #{backbone_base_moe_forward.4} parent=0 // loop_footer_branch
    %8 = sbr.rel target = $region3
  $region8: #{backbone_base_moe_forward.4} parent=0 // loop_exit
    _

// kernel: backbone_base_moe_forward.5
$region0: #{backbone_base_moe_forward.5}
  #allocation0 [shape = 'u32[]', space=smem, size = 0x4, offset = 0x4, fixed_abs, tag = 'smem constant byte address 0x4 - core index']
  #allocation1 [shape = 'u32[72,128]{1,0:T(1,128)}', space=vmem, size = 0x9000, scoped, tag = 'internal scratch']
  %s0 = inlined_call_operand.vmem [shape: bf16[16,80], index: 0, kind: input, shape index: {}]
  %s1 = inlined_call_operand.vmem [shape: f32[16,1], index: 1, kind: input, shape index: {}]
  %s2 = inlined_call_operand.vmem [shape: bf16[2,80,64], index: 2, kind: input, shape index: {}]
  %s3 = inlined_call_operand.vmem [shape: bf16[2,16,64], index: 3, kind: output, shape index: {}]
  %s4 = sld [smem:[#allocation0]]
  $region45: #{backbone_base_moe_forward.5} parent=0
    _
  %s6 = ssub.s32 1, %s4
  %s7 = scalar_select 0, %s6, %s4
  loop: start=0, step=1, limit=4
  $region2: #{backbone_base_moe_forward.5} parent=0 // loop_pre_header
    _
  $region3: #{backbone_base_moe_forward.5} parent=0 // loop_header
    %s9 = sphi 0, %s13
    %p10 = scmp.ge.s32.totalorder %s9, 4
    %s16 = sphi 0, %s28
    %s17 = sphi 0, %s24
    %s18 = sphi 0, %s16
    %s19 = sphi 0, %s17
    %s20 = sphi 0, %s18
    %s21 = sphi 0, %s19
    %s29 = sphi 0, %s29
    %s31 = sphi 0, %s29
    %s32 = sphi 0, %s31
    %s46 = sphi 0, %s32
    %s50 = sphi 0, %s50
    %s52 = sphi 0, %s50
    %s53 = sphi 0, %s52
    %s67 = sphi 0, %s53
    %s75 = sphi 0, %s77
    %s78 = sphi 0, %s75
    %s79 = sphi 0, %s78
    %s95 = sphi 0, %s79
    %s103 = sphi 0, %s105
    %s106 = sphi 0, %s103
    %s107 = sphi 0, %s106
    %s123 = sphi 0, %s107
  $region4: #{backbone_base_moe_forward.5} parent=0 // loop_header_branch
    %12 = sbr.rel (%p10) target = $region8
  $region5: #{backbone_base_moe_forward.5} parent=0 // loop_body
    %s14 = ssub.s32 %s9, 1
    %s15 = ssub.s32 %s9, 2
    %s22 = sadd.s32 1, %s17
    %p23 = scmp.ge.s32.totalorder %s22, 1
    %s24 = scalar_select %p23, 0, %s22
    %s25 = sadd.s32 1, %s16
    %s26 = scalar_select %p23, %s25, %s16
    %p27 = scmp.ge.s32.totalorder %s26, 2
    %s28 = scalar_select %p27, 0, %s26
    %s30 = sadd.s32 %s29, 1
    %p33 = scmp.eq.s32.totalorder %s9, 1
    %p34 = scmp.ne.s32.totalorder %s29, %s31
    %p35 = scmp.eq.s32.totalorder %s9, 0
    %p36 = por %p34, %p35
    %p37 = scmp.ne.s32.totalorder %s29, %s31
    %p38 = scmp.eq.s32.totalorder %s14, 1
    %p39 = por %p37, %p38
    %p40 = scmp.ne.s32.totalorder %s31, %s32
    %p41 = scmp.eq.s32.totalorder %s14, 0
    %p42 = por %p40, %p41
    %p43 = scmp.ne.s32.totalorder %s31, %s32
    %p44 = scmp.eq.s32.totalorder %s15, 1
    %p45 = por %p43, %p44
    %p47 = scmp.ne.s32.totalorder %s32, %s46
    %p48 = scmp.eq.s32.totalorder %s15, 0
    %p49 = por %p47, %p48
    %s51 = sadd.s32 %s50, 1
    %p54 = scmp.eq.s32.totalorder %s9, 1
    %p55 = scmp.ne.s32.totalorder %s50, %s52
    %p56 = scmp.eq.s32.totalorder %s9, 0
    %p57 = por %p55, %p56
    %p58 = scmp.ne.s32.totalorder %s50, %s52
    %p59 = scmp.eq.s32.totalorder %s14, 1
    %p60 = por %p58, %p59
    %p61 = scmp.ne.s32.totalorder %s52, %s53
    %p62 = scmp.eq.s32.totalorder %s14, 0
    %p63 = por %p61, %p62
    %p64 = scmp.ne.s32.totalorder %s52, %s53
    %p65 = scmp.eq.s32.totalorder %s15, 1
    %p66 = por %p64, %p65
    %p68 = scmp.ne.s32.totalorder %s53, %s67
    %p69 = scmp.eq.s32.totalorder %s15, 0
    %p70 = por %p68, %p69
    %s71 = ssub.s32 %s16, %s28
    %s72 = ssub.s32 %s17, %s24
    %s73 = sor.u32 %s71, %s72
    %p74 = scmp.eq.s32.totalorder %s73, 0
    %s76 = sadd.s32 %s75, 1
    %s77 = scalar_select %p74, %s75, %s76
    %p80 = pneg %p74
    %p81 = scmp.eq.s32.totalorder %s9, 1
    %p82 = por %p80, %p81
    %p83 = scmp.ne.s32.totalorder %s75, %s78
    %p84 = scmp.eq.s32.totalorder %s9, 0
    %p85 = por %p83, %p84
    %p86 = scmp.ne.s32.totalorder %s75, %s78
    %p87 = scmp.eq.s32.totalorder %s14, 1
    %p88 = por %p86, %p87
    %p89 = scmp.ne.s32.totalorder %s78, %s79
    %p90 = scmp.eq.s32.totalorder %s14, 0
    %p91 = por %p89, %p90
    %p92 = scmp.ne.s32.totalorder %s78, %s79
    %p93 = scmp.eq.s32.totalorder %s15, 1
    %p94 = por %p92, %p93
    %p96 = scmp.ne.s32.totalorder %s79, %s95
    %p97 = scmp.eq.s32.totalorder %s15, 0
    %p98 = por %p96, %p97
    %s99 = ssub.s32 %s16, %s28
    %s100 = ssub.s32 %s17, %s24
    %s101 = sor.u32 %s99, %s100
    %p102 = scmp.eq.s32.totalorder %s101, 0
    %s104 = sadd.s32 %s103, 1
    %s105 = scalar_select %p102, %s103, %s104
    %p108 = pneg %p102
    %p109 = scmp.eq.s32.totalorder %s9, 1
    %p110 = por %p108, %p109
    %p111 = scmp.ne.s32.totalorder %s103, %s106
    %p112 = scmp.eq.s32.totalorder %s9, 0
    %p113 = por %p111, %p112
    %p114 = scmp.ne.s32.totalorder %s103, %s106
    %p115 = scmp.eq.s32.totalorder %s14, 1
    %p116 = por %p114, %p115
    %p117 = scmp.ne.s32.totalorder %s106, %s107
    %p118 = scmp.eq.s32.totalorder %s14, 0
    %p119 = por %p117, %p118
    %p120 = scmp.ne.s32.totalorder %s106, %s107
    %p121 = scmp.eq.s32.totalorder %s15, 1
    %p122 = por %p120, %p121
    %p124 = scmp.ne.s32.totalorder %s107, %s123
    %p125 = scmp.eq.s32.totalorder %s15, 0
    %p126 = por %p124, %p125
    %p127 = scmp.le.s32.totalorder 1, %s9
    %p128 = scmp.lt.s32.totalorder %s9, 3
    %p129 = pnand %p127, %p128
    %p130 = pneg %p129
    // Predicated region
    $region9: #{backbone_base_moe_forward.5} parent=5 // pred_check
      _
    $region10: #{backbone_base_moe_forward.5} parent=5 // pred_check_branch
      %132 = sbr.rel (%p129) target = $region12
    $region11: #{backbone_base_moe_forward.5} parent=5 // pred_region
      %s133 = ssub.s32 %s9, 1
      // Predicated region
      $region13: #{backbone_base_moe_forward.5} parent=11 // pred_check
        %p134 = pneg %p42
      $region14: #{backbone_base_moe_forward.5} parent=11 // pred_check_branch
        %136 = sbr.rel (%p134) target = $region16
      $region15: #{backbone_base_moe_forward.5} parent=11 // pred_region
        _
      $region16: #{backbone_base_moe_forward.5} parent=11 // pred_fallthru
        _
      // Predicated region
      $region17: #{backbone_base_moe_forward.5} parent=11 // pred_check
        %p137 = pneg %p63
      $region18: #{backbone_base_moe_forward.5} parent=11 // pred_check_branch
        %139 = sbr.rel (%p137) target = $region20
      $region19: #{backbone_base_moe_forward.5} parent=11 // pred_region
        _
      $region20: #{backbone_base_moe_forward.5} parent=11 // pred_fallthru
        _
    $region12: #{backbone_base_moe_forward.5} parent=5 // pred_fallthru
      _
    %p140 = scmp.lt.s32.totalorder %s9, 2
    // Predicated region
    $region21: #{backbone_base_moe_forward.5} parent=5 // pred_check
      %p141 = pneg %p140
    $region22: #{backbone_base_moe_forward.5} parent=5 // pred_check_branch
      %143 = sbr.rel (%p141) target = $region24
    $region23: #{backbone_base_moe_forward.5} parent=5 // pred_region
      // Predicated region
      $region25: #{backbone_base_moe_forward.5} parent=23 // pred_check
        %p144 = pneg %p85
      $region26: #{backbone_base_moe_forward.5} parent=23 // pred_check_branch
        %146 = sbr.rel (%p144) target = $region28
      $region27: #{backbone_base_moe_forward.5} parent=23 // pred_region
        %p147 = scmp.lt.s32.totalorder %s16, 1
        %s148 = scalar_select %p147, %s16, 1
        %p149 = scmp.lt.s32.totalorder %s17, 0
        %s150 = scalar_select %p149, %s17, 0
        %s151 = smul.addr %s148, 10
        %s152 = sadd.s32 %s150, %s151
        %s153 = smul.addr %s152, 4
        %s154 = scalar_lea.vmem %s2, %s153
      $region28: #{backbone_base_moe_forward.5} parent=23 // pred_fallthru
        _
    $region24: #{backbone_base_moe_forward.5} parent=5 // pred_fallthru
      _
    %p155 = scmp.le.s32.totalorder 1, %s9
    %p156 = scmp.lt.s32.totalorder %s9, 3
    %p157 = pnand %p155, %p156
    %p158 = pneg %p157
    // Predicated region
    $region29: #{backbone_base_moe_forward.5} parent=5 // pred_check
      _
    $region30: #{backbone_base_moe_forward.5} parent=5 // pred_check_branch
      %160 = sbr.rel (%p157) target = $region32
    $region31: #{backbone_base_moe_forward.5} parent=5 // pred_region
      %s161 = ssub.s32 %s9, 1
      %p162 = pneg %p42
      %p163 = pneg %p39
      %p164 = pneg %p63
      %p165 = pneg %p60
      %p166 = scmp.lt.s32.totalorder %s18, 1
      %s167 = scalar_select %p166, %s18, 1
      %p168 = scmp.lt.s32.totalorder %s19, 0
      %s169 = scalar_select %p168, %s19, 0
      %s170 = smul.addr %s167, 10
      %s171 = sadd.s32 %s169, %s170
      %s172 = smul.addr %s171, 4
      %s173 = scalar_lea.vmem %s2, %s172
      %p174 = pneg %p91
      %p175 = pneg %p88
      %p176 = pneg %p119
      %p177 = pneg %p116
      %p178 = scmp.lt.s32.totalorder %s18, 1
      %s179 = scalar_select %p178, %s18, 1
      %p180 = scmp.lt.s32.totalorder %s19, 0
      %s181 = scalar_select %p180, %s19, 0
      %s182 = smul.addr %s179, 2
      %s183 = sadd.s32 %s181, %s182
      %s184 = smul.addr %s183, 4
      %s185 = scalar_lea.vmem %s3, %s184
      %p186 = scmp.lt.s32.totalorder %s18, 1
      %s187 = scalar_select %p186, %s18, 1
      %p188 = scmp.lt.s32.totalorder %s19, 0
      %s189 = scalar_select %p188, %s19, 0
      %s190 = smul.addr %s187, 10
      %s191 = sadd.s32 %s189, %s190
      %s192 = smul.addr %s191, 4
      %s193 = scalar_lea.vmem %s2, %s192
      %p194 = scmp.lt.s32.totalorder %s18, 1
      %s195 = scalar_select %p194, %s18, 1
      %p196 = scmp.lt.s32.totalorder %s19, 0
      %s197 = scalar_select %p196, %s19, 0
      %s198 = smul.addr %s195, 2
      %s199 = sadd.s32 %s197, %s198
      %s200 = smul.addr %s199, 4
      %s201 = scalar_lea.vmem %s3, %s200
      %v203 = vld [vmem:[%s0] sm:$0xf]
      %v204 = vld [vmem:[%s0 + $0x4] sm:$0xf]
      %v205 = vld [vmem:[%s193] sm:$0xf]
      %v206 = vld [vmem:[%s193 + $0x4] sm:$0xf]
      %v207 = vld [vmem:[%s193 + $0x8] sm:$0xf]
      %v208 = vld [vmem:[%s193 + $0xc] sm:$0xf]
      %v209 = vld [vmem:[%s193 + $0x10] sm:$0xf]
      %v210 = vld [vmem:[%s193 + $0x14] sm:$0xf]
      %v211 = vld [vmem:[%s193 + $0x18] sm:$0xf]
      %v212 = vld [vmem:[%s193 + $0x1c] sm:$0xf]
      %v213 = vld [vmem:[%s193 + $0x20] sm:$0xf]
      %v214 = vld [vmem:[%s193 + $0x24] sm:$0xf]
      %v215 = vld [vmem:[%s1] sm:$0xff]
      %v216 = vld [vmem:[%s1 + $0x8] sm:$0xff]
      %218 = vset.pattern.permute.xlu0 0
      %219 = vperm.xlu0 %218, %v215
      %v220 = vpop.permute.xlu0 %219
      %223 = vset.pattern.permute.xlu0 0
      %224 = vperm.xlu0 %223, %v216
      %v225 = vpop.permute.xlu0 %224
      %v229 = vunpack.c.l.b16 %v203
      %v230 = vunpack.c.l.b16 %v204
      %v231 = vpack.c.b16 %v230, %v229
      %v242 = vunpack.c.l.b16 %v205
      %v243 = vunpack.c.l.b16 %v206
      %v244 = vunpack.c.l.b16 %v207
      %v245 = vunpack.c.l.b16 %v208
      %v246 = vunpack.c.l.b16 %v209
      %v247 = vunpack.c.l.b16 %v210
      %v248 = vunpack.c.l.b16 %v211
      %v249 = vunpack.c.l.b16 %v212
      %v250 = vunpack.c.l.b16 %v213
      %v251 = vunpack.c.l.b16 %v214
      %v252 = vpack.c.b16 %v243, %v242
      %v253 = vpack.c.b16 %v245, %v244
      %v254 = vpack.c.b16 %v247, %v246
      %v255 = vpack.c.b16 %v249, %v248
      %v256 = vpack.c.b16 %v251, %v250
      %vm262 = vcmask 654336
      %v264 = vsel %vm262, %v231, 0
      %266 = vmatpush.bf16.msra.mxu0 0
      %267 = vmatpush.bf16.msra.mxu0 0
      %268 = vmatpush.bf16.msra.mxu0 0
      %269 = vmatpush.bf16.msra.mxu0 %v256
      %270 = vmatpush.bf16.msra.mxu0 %v255
      %271 = vmatpush.bf16.msra.mxu0 %v254
      %272 = vmatpush.bf16.msra.mxu0 %v253
      %273 = vmatpush.bf16.msra.mxu0 %v252
      %274 = vmatmul.bf16.gmra.mxu0 %v264
      %v275 = vpop.f32.mrf.mxu0
      %v276 = vadd.f32 %v220, %v275
      %v277 = vpop.f32.mrf.mxu0
      %v278 = vadd.f32 %v225, %v277
      %279 = vdwg.mxu0
      %v280 = vmax.f32 %v276, 0.0
      %v281 = vmax.f32 %v278, 0.0
      %v282 = vpack.c.bf16 %v280, %v280
      %v283 = vpack.c.bf16 %v281, %v281
      %vm284 = vcmask 519168
      %285 = vst.msk [vmem:[%s201] sm:$0xf] %vm284, %v282
      %286 = vst.msk [vmem:[%s201 + $0x4] sm:$0xf] %vm284, %v283
      %p287 = scmp.lt.s32.totalorder %s18, 1
      %s288 = scalar_select %p287, %s18, 1
      %p289 = scmp.lt.s32.totalorder %s19, 0
      %s290 = scalar_select %p289, %s19, 0
      %s291 = smul.addr %s288, 2
      %s292 = sadd.s32 %s290, %s291
      %s293 = smul.addr %s292, 4
      %s294 = scalar_lea.vmem %s3, %s293
      // Predicated region
      $region33: #{backbone_base_moe_forward.5} parent=31 // pred_check
        %p295 = pneg %p116
      $region34: #{backbone_base_moe_forward.5} parent=31 // pred_check_branch
        %297 = sbr.rel (%p295) target = $region36
      $region35: #{backbone_base_moe_forward.5} parent=31 // pred_region
        _
      $region36: #{backbone_base_moe_forward.5} parent=31 // pred_fallthru
        _
    $region32: #{backbone_base_moe_forward.5} parent=5 // pred_fallthru
      _
    %p298 = scmp.le.s32.totalorder 2, %s9
    // Predicated region
    $region37: #{backbone_base_moe_forward.5} parent=5 // pred_check
      %p299 = pneg %p298
    $region38: #{backbone_base_moe_forward.5} parent=5 // pred_check_branch
      %301 = sbr.rel (%p299) target = $region40
    $region39: #{backbone_base_moe_forward.5} parent=5 // pred_region
      %s302 = ssub.s32 %s9, 2
      // Predicated region
      $region41: #{backbone_base_moe_forward.5} parent=39 // pred_check
        %p303 = pneg %p122
      $region42: #{backbone_base_moe_forward.5} parent=39 // pred_check_branch
        %305 = sbr.rel (%p303) target = $region44
      $region43: #{backbone_base_moe_forward.5} parent=39 // pred_region
        %p306 = scmp.lt.s32.totalorder %s20, 1
        %s307 = scalar_select %p306, %s20, 1
        %p308 = scmp.lt.s32.totalorder %s21, 0
        %s309 = scalar_select %p308, %s21, 0
        %s310 = smul.addr %s307, 2
        %s311 = sadd.s32 %s309, %s310
        %s312 = smul.addr %s311, 4
        %s313 = scalar_lea.vmem %s3, %s312
      $region44: #{backbone_base_moe_forward.5} parent=39 // pred_fallthru
        _
    $region40: #{backbone_base_moe_forward.5} parent=5 // pred_fallthru
      _
  $region6: #{backbone_base_moe_forward.5} parent=0 // loop_footer
    %s13 = sadd.s32 1, %s9
  $region7: #{backbone_base_moe_forward.5} parent=0 // loop_footer_branch
    %8 = sbr.rel target = $region3
  $region8: #{backbone_base_moe_forward.5} parent=0 // loop_exit
    _

// kernel: backbone_base_moe_forward.6
$region0: #{backbone_base_moe_forward.6}
  #allocation0 [shape = 'u32[]', space=smem, size = 0x4, offset = 0x4, fixed_abs, tag = 'smem constant byte address 0x4 - core index']
  #allocation1 [shape = 'u32[72,128]{1,0:T(1,128)}', space=vmem, size = 0x9000, scoped, tag = 'internal scratch']
  #allocation2 [shape = 's32[1]{0}', space=sflag, size = 0x4, scoped, tag = 'scoped memory for backbone_base_moe_forward.6']
  #allocation3 [shape = 'u8[512]{0}', space=smem, size = 0x200, scoped, tag = 'prefetched SMEM operand 0']
  %s0 = inlined_call_operand.vmem [shape: s32[2], index: 0, kind: input, shape index: {}]
  %s1 = inlined_call_operand.vmem [shape: bf16[2,32,144], index: 1, kind: input, shape index: {}]
  %s2 = inlined_call_operand.vmem [shape: f32[2,32,1], index: 2, kind: input, shape index: {}]
  %s3 = inlined_call_operand.vmem [shape: bf16[2,144,16], index: 3, kind: input, shape index: {}]
  %s4 = inlined_call_operand.vmem [shape: bf16[2,32,16], index: 4, kind: output, shape index: {}]
  %s5 = sld [smem:[#allocation0]]
  $region45: #{backbone_base_moe_forward.6} parent=0
    _
  %s7 = ssub.s32 1, %s5
  %s8 = scalar_select 0, %s7, %s5
  %s10 = sshll.u32 %s0, 4
  %s11 = int_to_ptr.vmem [resolvable:$true] %s10
  %13 = dma.vmem_to_smem %s11, 16, [#allocation3], [#allocation2]
  %15 = dma.done [#allocation2], 16
  %16 = sfence
  loop: start=0, step=1, limit=4
  $region2: #{backbone_base_moe_forward.6} parent=0 // loop_pre_header
    _
  $region3: #{backbone_base_moe_forward.6} parent=0 // loop_header
    %s18 = sphi 0, %s22
    %p19 = scmp.ge.s32.totalorder %s18, 4
    %s25 = sphi 0, %s37
    %s26 = sphi 0, %s33
    %s27 = sphi 0, %s25
    %s28 = sphi 0, %s26
    %s29 = sphi 0, %s27
    %s30 = sphi 0, %s28
    %s42 = sphi 0, %s44
    %s45 = sphi 0, %s42
    %s46 = sphi 0, %s45
    %s62 = sphi 0, %s46
    %s70 = sphi 0, %s72
    %s73 = sphi 0, %s70
    %s74 = sphi 0, %s73
    %s90 = sphi 0, %s74
    %s98 = sphi 0, %s100
    %s101 = sphi 0, %s98
    %s102 = sphi 0, %s101
    %s118 = sphi 0, %s102
    %s126 = sphi 0, %s128
    %s129 = sphi 0, %s126
    %s130 = sphi 0, %s129
    %s146 = sphi 0, %s130
  $region4: #{backbone_base_moe_forward.6} parent=0 // loop_header_branch
    %21 = sbr.rel (%p19) target = $region8
  $region5: #{backbone_base_moe_forward.6} parent=0 // loop_body
    %s23 = ssub.s32 %s18, 1
    %s24 = ssub.s32 %s18, 2
    %s31 = sadd.s32 1, %s26
    %p32 = scmp.ge.s32.totalorder %s31, 1
    %s33 = scalar_select %p32, 0, %s31
    %s34 = sadd.s32 1, %s25
    %s35 = scalar_select %p32, %s34, %s25
    %p36 = scmp.ge.s32.totalorder %s35, 2
    %s37 = scalar_select %p36, 0, %s35
    %s38 = sld [smem:[#allocation3 + %s25]]
    %s39 = sld [smem:[#allocation3 + %s37]]
    %s40 = ssub.s32 %s38, %s39
    %p41 = scmp.eq.s32.totalorder %s40, 0
    %s43 = sadd.s32 %s42, 1
    %s44 = scalar_select %p41, %s42, %s43
    %p47 = pneg %p41
    %p48 = scmp.eq.s32.totalorder %s18, 1
    %p49 = por %p47, %p48
    %p50 = scmp.ne.s32.totalorder %s42, %s45
    %p51 = scmp.eq.s32.totalorder %s18, 0
    %p52 = por %p50, %p51
    %p53 = scmp.ne.s32.totalorder %s42, %s45
    %p54 = scmp.eq.s32.totalorder %s23, 1
    %p55 = por %p53, %p54
    %p56 = scmp.ne.s32.totalorder %s45, %s46
    %p57 = scmp.eq.s32.totalorder %s23, 0
    %p58 = por %p56, %p57
    %p59 = scmp.ne.s32.totalorder %s45, %s46
    %p60 = scmp.eq.s32.totalorder %s24, 1
    %p61 = por %p59, %p60
    %p63 = scmp.ne.s32.totalorder %s46, %s62
    %p64 = scmp.eq.s32.totalorder %s24, 0
    %p65 = por %p63, %p64
    %s66 = sld [smem:[#allocation3 + %s25]]
    %s67 = sld [smem:[#allocation3 + %s37]]
    %s68 = ssub.s32 %s66, %s67
    %p69 = scmp.eq.s32.totalorder %s68, 0
    %s71 = sadd.s32 %s70, 1
    %s72 = scalar_select %p69, %s70, %s71
    %p75 = pneg %p69
    %p76 = scmp.eq.s32.totalorder %s18, 1
    %p77 = por %p75, %p76
    %p78 = scmp.ne.s32.totalorder %s70, %s73
    %p79 = scmp.eq.s32.totalorder %s18, 0
    %p80 = por %p78, %p79
    %p81 = scmp.ne.s32.totalorder %s70, %s73
    %p82 = scmp.eq.s32.totalorder %s23, 1
    %p83 = por %p81, %p82
    %p84 = scmp.ne.s32.totalorder %s73, %s74
    %p85 = scmp.eq.s32.totalorder %s23, 0
    %p86 = por %p84, %p85
    %p87 = scmp.ne.s32.totalorder %s73, %s74
    %p88 = scmp.eq.s32.totalorder %s24, 1
    %p89 = por %p87, %p88
    %p91 = scmp.ne.s32.totalorder %s74, %s90
    %p92 = scmp.eq.s32.totalorder %s24, 0
    %p93 = por %p91, %p92
    %s94 = ssub.s32 %s25, %s37
    %s95 = ssub.s32 %s26, %s33
    %s96 = sor.u32 %s94, %s95
    %p97 = scmp.eq.s32.totalorder %s96, 0
    %s99 = sadd.s32 %s98, 1
    %s100 = scalar_select %p97, %s98, %s99
    %p103 = pneg %p97
    %p104 = scmp.eq.s32.totalorder %s18, 1
    %p105 = por %p103, %p104
    %p106 = scmp.ne.s32.totalorder %s98, %s101
    %p107 = scmp.eq.s32.totalorder %s18, 0
    %p108 = por %p106, %p107
    %p109 = scmp.ne.s32.totalorder %s98, %s101
    %p110 = scmp.eq.s32.totalorder %s23, 1
    %p111 = por %p109, %p110
    %p112 = scmp.ne.s32.totalorder %s101, %s102
    %p113 = scmp.eq.s32.totalorder %s23, 0
    %p114 = por %p112, %p113
    %p115 = scmp.ne.s32.totalorder %s101, %s102
    %p116 = scmp.eq.s32.totalorder %s24, 1
    %p117 = por %p115, %p116
    %p119 = scmp.ne.s32.totalorder %s102, %s118
    %p120 = scmp.eq.s32.totalorder %s24, 0
    %p121 = por %p119, %p120
    %s122 = ssub.s32 %s25, %s37
    %s123 = ssub.s32 %s26, %s33
    %s124 = sor.u32 %s122, %s123
    %p125 = scmp.eq.s32.totalorder %s124, 0
    %s127 = sadd.s32 %s126, 1
    %s128 = scalar_select %p125, %s126, %s127
    %p131 = pneg %p125
    %p132 = scmp.eq.s32.totalorder %s18, 1
    %p133 = por %p131, %p132
    %p134 = scmp.ne.s32.totalorder %s126, %s129
    %p135 = scmp.eq.s32.totalorder %s18, 0
    %p136 = por %p134, %p135
    %p137 = scmp.ne.s32.totalorder %s126, %s129
    %p138 = scmp.eq.s32.totalorder %s23, 1
    %p139 = por %p137, %p138
    %p140 = scmp.ne.s32.totalorder %s129, %s130
    %p141 = scmp.eq.s32.totalorder %s23, 0
    %p142 = por %p140, %p141
    %p143 = scmp.ne.s32.totalorder %s129, %s130
    %p144 = scmp.eq.s32.totalorder %s24, 1
    %p145 = por %p143, %p144
    %p147 = scmp.ne.s32.totalorder %s130, %s146
    %p148 = scmp.eq.s32.totalorder %s24, 0
    %p149 = por %p147, %p148
    %p150 = scmp.le.s32.totalorder 1, %s18
    %p151 = scmp.lt.s32.totalorder %s18, 3
    %p152 = pnand %p150, %p151
    %p153 = pneg %p152
    // Predicated region
    $region9: #{backbone_base_moe_forward.6} parent=5 // pred_check
      _
    $region10: #{backbone_base_moe_forward.6} parent=5 // pred_check_branch
      %155 = sbr.rel (%p152) target = $region12
    $region11: #{backbone_base_moe_forward.6} parent=5 // pred_region
      %s156 = ssub.s32 %s18, 1
    $region12: #{backbone_base_moe_forward.6} parent=5 // pred_fallthru
      _
    %p157 = scmp.lt.s32.totalorder %s18, 2
    // Predicated region
    $region13: #{backbone_base_moe_forward.6} parent=5 // pred_check
      %p158 = pneg %p157
    $region14: #{backbone_base_moe_forward.6} parent=5 // pred_check_branch
      %160 = sbr.rel (%p158) target = $region16
    $region15: #{backbone_base_moe_forward.6} parent=5 // pred_region
      // Predicated region
      $region17: #{backbone_base_moe_forward.6} parent=15 // pred_check
        %p161 = pneg %p52
      $region18: #{backbone_base_moe_forward.6} parent=15 // pred_check_branch
        %163 = sbr.rel (%p161) target = $region20
      $region19: #{backbone_base_moe_forward.6} parent=15 // pred_region
        %s164 = sld [smem:[#allocation3 + %s25]]
        %p165 = scmp.lt.s32.totalorder %s164, 1
        %s166 = scalar_select %p165, %s164, 1
        %s167 = smul.addr %s166, 8
        %s168 = smul.addr %s167, 4
        %s169 = scalar_lea.vmem %s1, %s168
        %s170 = sld [smem:[#allocation3 + %s25]]
      $region20: #{backbone_base_moe_forward.6} parent=15 // pred_fallthru
        _
      // Predicated region
      $region21: #{backbone_base_moe_forward.6} parent=15 // pred_check
        %p171 = pneg %p80
      $region22: #{backbone_base_moe_forward.6} parent=15 // pred_check_branch
        %173 = sbr.rel (%p171) target = $region24
      $region23: #{backbone_base_moe_forward.6} parent=15 // pred_region
        %s174 = sld [smem:[#allocation3 + %s25]]
        %p175 = scmp.lt.s32.totalorder %s174, 1
        %s176 = scalar_select %p175, %s174, 1
        %s177 = smul.addr %s176, 4
        %s178 = smul.addr %s177, 8
        %s179 = scalar_lea.vmem %s2, %s178
        %s180 = sld [smem:[#allocation3 + %s25]]
      $region24: #{backbone_base_moe_forward.6} parent=15 // pred_fallthru
        _
      // Predicated region
      $region25: #{backbone_base_moe_forward.6} parent=15 // pred_check
        %p181 = pneg %p108
      $region26: #{backbone_base_moe_forward.6} parent=15 // pred_check_branch
        %183 = sbr.rel (%p181) target = $region28
      $region27: #{backbone_base_moe_forward.6} parent=15 // pred_region
        %p184 = scmp.lt.s32.totalorder %s25, 1
        %s185 = scalar_select %p184, %s25, 1
        %p186 = scmp.lt.s32.totalorder %s26, 0
        %s187 = scalar_select %p186, %s26, 0
        %s188 = smul.addr %s185, 18
        %s189 = sadd.s32 %s187, %s188
        %s190 = smul.addr %s189, 4
        %s191 = scalar_lea.vmem %s3, %s190
      $region28: #{backbone_base_moe_forward.6} parent=15 // pred_fallthru
        _
    $region16: #{backbone_base_moe_forward.6} parent=5 // pred_fallthru
      _
    %p192 = scmp.le.s32.totalorder 1, %s18
    %p193 = scmp.lt.s32.totalorder %s18, 3
    %p194 = pnand %p192, %p193
    %p195 = pneg %p194
    // Predicated region
    $region29: #{backbone_base_moe_forward.6} parent=5 // pred_check
      _
    $region30: #{backbone_base_moe_forward.6} parent=5 // pred_check_branch
      %197 = sbr.rel (%p194) target = $region32
    $region31: #{backbone_base_moe_forward.6} parent=5 // pred_region
      %s198 = ssub.s32 %s18, 1
      %s199 = sld [smem:[#allocation3 + %s27]]
      %p200 = scmp.lt.s32.totalorder %s199, 1
      %s201 = scalar_select %p200, %s199, 1
      %s202 = smul.addr %s201, 8
      %s203 = smul.addr %s202, 4
      %s204 = scalar_lea.vmem %s1, %s203
      %p205 = pneg %p58
      %p206 = pneg %p55
      %s207 = sld [smem:[#allocation3 + %s27]]
      %p208 = scmp.lt.s32.totalorder %s207, 1
      %s209 = scalar_select %p208, %s207, 1
      %s210 = smul.addr %s209, 4
      %s211 = smul.addr %s210, 8
      %s212 = scalar_lea.vmem %s2, %s211
      %p213 = pneg %p86
      %p214 = pneg %p83
      %p215 = scmp.lt.s32.totalorder %s27, 1
      %s216 = scalar_select %p215, %s27, 1
      %p217 = scmp.lt.s32.totalorder %s28, 0
      %s218 = scalar_select %p217, %s28, 0
      %s219 = smul.addr %s216, 18
      %s220 = sadd.s32 %s218, %s219
      %s221 = smul.addr %s220, 4
      %s222 = scalar_lea.vmem %s3, %s221
      %p223 = pneg %p114
      %p224 = pneg %p111
      %p225 = pneg %p142
      %p226 = pneg %p139
      %p227 = scmp.lt.s32.totalorder %s27, 1
      %s228 = scalar_select %p227, %s27, 1
      %p229 = scmp.lt.s32.totalorder %s28, 0
      %s230 = scalar_select %p229, %s28, 0
      %s231 = smul.addr %s228, 4
      %s232 = sadd.s32 %s230, %s231
      %s233 = smul.addr %s232, 4
      %s234 = scalar_lea.vmem %s4, %s233
      %s235 = sld [smem:[#allocation3 + %s27]]
      %p236 = scmp.lt.s32.totalorder %s235, 1
      %s237 = scalar_select %p236, %s235, 1
      %s238 = smul.addr %s237, 8
      %s239 = smul.addr %s238, 4
      %s240 = scalar_lea.vmem %s1, %s239
      %s241 = sld [smem:[#allocation3 + %s27]]
      %s242 = sld [smem:[#allocation3 + %s27]]
      %p243 = scmp.lt.s32.totalorder %s242, 1
      %s244 = scalar_select %p243, %s242, 1
      %s245 = smul.addr %s244, 4
      %s246 = smul.addr %s245, 8
      %s247 = scalar_lea.vmem %s2, %s246
      %s248 = sld [smem:[#allocation3 + %s27]]
      %p249 = scmp.lt.s32.totalorder %s27, 1
      %s250 = scalar_select %p249, %s27, 1
      %p251 = scmp.lt.s32.totalorder %s28, 0
      %s252 = scalar_select %p251, %s28, 0
      %s253 = smul.addr %s250, 18
      %s254 = sadd.s32 %s252, %s253
      %s255 = smul.addr %s254, 4
      %s256 = scalar_lea.vmem %s3, %s255
      %p257 = scmp.lt.s32.totalorder %s27, 1
      %s258 = scalar_select %p257, %s27, 1
      %p259 = scmp.lt.s32.totalorder %s28, 0
      %s260 = scalar_select %p259, %s28, 0
      %s261 = smul.addr %s258, 4
      %s262 = sadd.s32 %s260, %s261
      %s263 = smul.addr %s262, 4
      %s264 = scalar_lea.vmem %s4, %s263
      %v266 = vld [vmem:[%s240] sm:$0xff]
      %v267 = vld [vmem:[%s240 + $0x8] sm:$0xff]
      %v268 = vld [vmem:[%s240 + $0x10] sm:$0xff]
      %v269 = vld [vmem:[%s240 + $0x18] sm:$0xff]
      %v270 = vld [vmem:[%s256] sm:$0xf]
      %v271 = vld [vmem:[%s256 + $0x4] sm:$0xf]
      %v272 = vld [vmem:[%s256 + $0x8] sm:$0xf]
      %v273 = vld [vmem:[%s256 + $0xc] sm:$0xf]
      %v274 = vld [vmem:[%s256 + $0x10] sm:$0xf]
      %v275 = vld [vmem:[%s256 + $0x14] sm:$0xf]
      %v276 = vld [vmem:[%s256 + $0x18] sm:$0xf]
      %v277 = vld [vmem:[%s256 + $0x1c] sm:$0xf]
      %v278 = vld [vmem:[%s256 + $0x20] sm:$0xf]
      %v279 = vld [vmem:[%s256 + $0x24] sm:$0xf]
      %v280 = vld [vmem:[%s256 + $0x28] sm:$0xf]
      %v281 = vld [vmem:[%s256 + $0x2c] sm:$0xf]
      %v282 = vld [vmem:[%s256 + $0x30] sm:$0xf]
      %v283 = vld [vmem:[%s256 + $0x34] sm:$0xf]
      %v284 = vld [vmem:[%s256 + $0x38] sm:$0xf]
      %v285 = vld [vmem:[%s256 + $0x3c] sm:$0xf]
      %v286 = vld [vmem:[%s256 + $0x40] sm:$0xf]
      %v287 = vld [vmem:[%s256 + $0x44] sm:$0xf]
      %v288 = vld [vmem:[%s247] sm:$0xff]
      %v289 = vld [vmem:[%s247 + $0x8] sm:$0xff]
      %v290 = vld [vmem:[%s247 + $0x10] sm:$0xff]
      %v291 = vld [vmem:[%s247 + $0x18] sm:$0xff]
      %293 = vset.pattern.permute.xlu0 0
      %294 = vperm.xlu0 %293, %v288
      %v295 = vpop.permute.xlu0 %294
      %298 = vset.pattern.permute.xlu0 0
      %299 = vperm.xlu0 %298, %v289
      %v300 = vpop.permute.xlu0 %299
      %303 = vset.pattern.permute.xlu0 0
      %304 = vperm.xlu0 %303, %v290
      %v305 = vpop.permute.xlu0 %304
      %308 = vset.pattern.permute.xlu0 0
      %309 = vperm.xlu0 %308, %v291
      %v310 = vpop.permute.xlu0 %309
      %v316 = vunpack.c.l.b16 %v266
      %v317 = vunpack.c.h.b16 %v266
      %v318 = vunpack.c.l.b16 %v267
      %v319 = vunpack.c.h.b16 %v267
      %v320 = vunpack.c.l.b16 %v268
      %v321 = vunpack.c.h.b16 %v268
      %v322 = vunpack.c.l.b16 %v269
      %v323 = vunpack.c.h.b16 %v269
      %v324 = vpack.c.b16 %v318, %v316
      %v325 = vpack.c.b16 %v319, %v317
      %v326 = vpack.c.b16 %v322, %v320
      %v327 = vpack.c.b16 %v323, %v321
      %v348 = vunpack.c.l.b16 %v270
      %v349 = vunpack.c.l.b16 %v271
      %v350 = vunpack.c.l.b16 %v272
      %v351 = vunpack.c.l.b16 %v273
      %v352 = vunpack.c.l.b16 %v274
      %v353 = vunpack.c.l.b16 %v275
      %v354 = vunpack.c.l.b16 %v276
      %v355 = vunpack.c.l.b16 %v277
      %v356 = vunpack.c.l.b16 %v278
      %v357 = vunpack.c.l.b16 %v279
      %v358 = vunpack.c.l.b16 %v280
      %v359 = vunpack.c.l.b16 %v281
      %v360 = vunpack.c.l.b16 %v282
      %v361 = vunpack.c.l.b16 %v283
      %v362 = vunpack.c.l.b16 %v284
      %v363 = vunpack.c.l.b16 %v285
      %v364 = vunpack.c.l.b16 %v286
      %v365 = vunpack.c.l.b16 %v287
      %v366 = vpack.c.b16 %v349, %v348
      %v367 = vpack.c.b16 %v351, %v350
      %v368 = vpack.c.b16 %v353, %v352
      %v369 = vpack.c.b16 %v355, %v354
      %v370 = vpack.c.b16 %v357, %v356
      %v371 = vpack.c.b16 %v359, %v358
      %v372 = vpack.c.b16 %v361, %v360
      %v373 = vpack.c.b16 %v363, %v362
      %v374 = vpack.c.b16 %v365, %v364
      %vm384 = vcmask 130048
      %v386 = vsel %vm384, %v325, 0
      %v389 = vsel %vm384, %v327, 0
      %391 = vmatpush.bf16.msra.mxu0 %v373
      %392 = vmatpush.bf16.msra.mxu0 %v372
      %393 = vmatpush.bf16.msra.mxu0 %v371
      %394 = vmatpush.bf16.msra.mxu0 %v370
      %395 = vmatpush.bf16.msra.mxu0 %v369
      %396 = vmatpush.bf16.msra.mxu0 %v368
      %397 = vmatpush.bf16.msra.mxu0 %v367
      %398 = vmatpush.bf16.msra.mxu0 %v366
      %399 = vmatmul.bf16.gmra.mxu0 %v324
      %v400 = vpop.f32.mrf.mxu0
      %v401 = vadd.f32 %v295, %v400
      %v402 = vpop.f32.mrf.mxu0
      %v403 = vadd.f32 %v300, %v402
      %404 = vmatmul.bf16.gmra.mxu0 %v326
      %v405 = vpop.f32.mrf.mxu0
      %v406 = vadd.f32 %v305, %v405
      %v407 = vpop.f32.mrf.mxu0
      %v408 = vadd.f32 %v310, %v407
      %409 = vdwg.mxu0
      %410 = vmatpush.bf16.msra.mxu0 0
      %411 = vmatpush.bf16.msra.mxu0 0
      %412 = vmatpush.bf16.msra.mxu0 0
      %413 = vmatpush.bf16.msra.mxu0 0
      %414 = vmatpush.bf16.msra.mxu0 0
      %415 = vmatpush.bf16.msra.mxu0 0
      %416 = vmatpush.bf16.msra.mxu0 0
      %417 = vmatpush.bf16.msra.mxu0 %v374
      %418 = vmatmul.bf16.gmra.mxu0 %v386
      %v419 = vpop.f32.mrf.mxu0
      %v420 = vadd.f32 %v401, %v419
      %v421 = vpop.f32.mrf.mxu0
      %v422 = vadd.f32 %v403, %v421
      %423 = vmatmul.bf16.gmra.mxu0 %v389
      %v424 = vpop.f32.mrf.mxu0
      %v425 = vadd.f32 %v406, %v424
      %v426 = vpop.f32.mrf.mxu0
      %v427 = vadd.f32 %v408, %v426
      %428 = vdwg.mxu0
      %v429 = vmax.f32 %v420, 0.0
      %v430 = vmax.f32 %v422, 0.0
      %v431 = vmax.f32 %v425, 0.0
      %v432 = vmax.f32 %v427, 0.0
      %v433 = vpack.c.bf16 %v429, %v429
      %v434 = vpack.c.bf16 %v430, %v430
      %v435 = vpack.c.bf16 %v431, %v431
      %v436 = vpack.c.bf16 %v432, %v432
      %vm437 = vcmask 125952
      %438 = vst.msk [vmem:[%s264] sm:$0xf] %vm437, %v433
      %439 = vst.msk [vmem:[%s264 + $0x4] sm:$0xf] %vm437, %v434
      %440 = vst.msk [vmem:[%s264 + $0x8] sm:$0xf] %vm437, %v435
      %441 = vst.msk [vmem:[%s264 + $0xc] sm:$0xf] %vm437, %v436
      %p442 = scmp.lt.s32.totalorder %s27, 1
      %s443 = scalar_select %p442, %s27, 1
      %p444 = scmp.lt.s32.totalorder %s28, 0
      %s445 = scalar_select %p444, %s28, 0
      %s446 = smul.addr %s443, 4
      %s447 = sadd.s32 %s445, %s446
      %s448 = smul.addr %s447, 4
      %s449 = scalar_lea.vmem %s4, %s448
      // Predicated region
      $region33: #{backbone_base_moe_forward.6} parent=31 // pred_check
        %p450 = pneg %p139
      $region34: #{backbone_base_moe_forward.6} parent=31 // pred_check_branch
        %452 = sbr.rel (%p450) target = $region36
      $region35: #{backbone_base_moe_forward.6} parent=31 // pred_region
        _
      $region36: #{backbone_base_moe_forward.6} parent=31 // pred_fallthru
        _
    $region32: #{backbone_base_moe_forward.6} parent=5 // pred_fallthru
      _
    %p453 = scmp.le.s32.totalorder 2, %s18
    // Predicated region
    $region37: #{backbone_base_moe_forward.6} parent=5 // pred_check
      %p454 = pneg %p453
    $region38: #{backbone_base_moe_forward.6} parent=5 // pred_check_branch
      %456 = sbr.rel (%p454) target = $region40
    $region39: #{backbone_base_moe_forward.6} parent=5 // pred_region
      %s457 = ssub.s32 %s18, 2
      // Predicated region
      $region41: #{backbone_base_moe_forward.6} parent=39 // pred_check
        %p458 = pneg %p145
      $region42: #{backbone_base_moe_forward.6} parent=39 // pred_check_branch
        %460 = sbr.rel (%p458) target = $region44
      $region43: #{backbone_base_moe_forward.6} parent=39 // pred_region
        %p461 = scmp.lt.s32.totalorder %s29, 1
        %s462 = scalar_select %p461, %s29, 1
        %p463 = scmp.lt.s32.totalorder %s30, 0
        %s464 = scalar_select %p463, %s30, 0
        %s465 = smul.addr %s462, 4
        %s466 = sadd.s32 %s464, %s465
        %s467 = smul.addr %s466, 4
        %s468 = scalar_lea.vmem %s4, %s467
      $region44: #{backbone_base_moe_forward.6} parent=39 // pred_fallthru
        _
    $region40: #{backbone_base_moe_forward.6} parent=5 // pred_fallthru
      _
  $region6: #{backbone_base_moe_forward.6} parent=0 // loop_footer
    %s22 = sadd.s32 1, %s18
  $region7: #{backbone_base_moe_forward.6} parent=0 // loop_footer_branch
    %17 = sbr.rel target = $region3
  $region8: #{backbone_base_moe_forward.6} parent=0 // loop_exit
    _

// kernel: backbone_base_moe_forward.7
$region0: #{backbone_base_moe_forward.7}
  #allocation0 [shape = 'u32[]', space=smem, size = 0x4, offset = 0x4, fixed_abs, tag = 'smem constant byte address 0x4 - core index']
  #allocation1 [shape = 'u32[72,128]{1,0:T(1,128)}', space=vmem, size = 0x9000, scoped, tag = 'internal scratch']
  %s0 = inlined_call_operand.vmem [shape: bf16[64,288], index: 0, kind: input, shape index: {}]
  %s1 = inlined_call_operand.vmem [shape: f32[64,1], index: 1, kind: input, shape index: {}]
  %s2 = inlined_call_operand.vmem [shape: bf16[2,288,4], index: 2, kind: input, shape index: {}]
  %s3 = inlined_call_operand.vmem [shape: bf16[2,64,4], index: 3, kind: output, shape index: {}]
  %s4 = sld [smem:[#allocation0]]
  $region45: #{backbone_base_moe_forward.7} parent=0
    _
  %s6 = ssub.s32 1, %s4
  %s7 = scalar_select 0, %s6, %s4
  loop: start=0, step=1, limit=4
  $region2: #{backbone_base_moe_forward.7} parent=0 // loop_pre_header
    _
  $region3: #{backbone_base_moe_forward.7} parent=0 // loop_header
    %s9 = sphi 0, %s13
    %p10 = scmp.ge.s32.totalorder %s9, 4
    %s16 = sphi 0, %s28
    %s17 = sphi 0, %s24
    %s18 = sphi 0, %s16
    %s19 = sphi 0, %s17
    %s20 = sphi 0, %s18
    %s21 = sphi 0, %s19
    %s29 = sphi 0, %s29
    %s31 = sphi 0, %s29
    %s32 = sphi 0, %s31
    %s46 = sphi 0, %s32
    %s50 = sphi 0, %s50
    %s52 = sphi 0, %s50
    %s53 = sphi 0, %s52
    %s67 = sphi 0, %s53
    %s75 = sphi 0, %s77
    %s78 = sphi 0, %s75
    %s79 = sphi 0, %s78
    %s95 = sphi 0, %s79
    %s103 = sphi 0, %s105
    %s106 = sphi 0, %s103
    %s107 = sphi 0, %s106
    %s123 = sphi 0, %s107
  $region4: #{backbone_base_moe_forward.7} parent=0 // loop_header_branch
    %12 = sbr.rel (%p10) target = $region8
  $region5: #{backbone_base_moe_forward.7} parent=0 // loop_body
    %s14 = ssub.s32 %s9, 1
    %s15 = ssub.s32 %s9, 2
    %s22 = sadd.s32 1, %s17
    %p23 = scmp.ge.s32.totalorder %s22, 1
    %s24 = scalar_select %p23, 0, %s22
    %s25 = sadd.s32 1, %s16
    %s26 = scalar_select %p23, %s25, %s16
    %p27 = scmp.ge.s32.totalorder %s26, 2
    %s28 = scalar_select %p27, 0, %s26
    %s30 = sadd.s32 %s29, 1
    %p33 = scmp.eq.s32.totalorder %s9, 1
    %p34 = scmp.ne.s32.totalorder %s29, %s31
    %p35 = scmp.eq.s32.totalorder %s9, 0
    %p36 = por %p34, %p35
    %p37 = scmp.ne.s32.totalorder %s29, %s31
    %p38 = scmp.eq.s32.totalorder %s14, 1
    %p39 = por %p37, %p38
    %p40 = scmp.ne.s32.totalorder %s31, %s32
    %p41 = scmp.eq.s32.totalorder %s14, 0
    %p42 = por %p40, %p41
    %p43 = scmp.ne.s32.totalorder %s31, %s32
    %p44 = scmp.eq.s32.totalorder %s15, 1
    %p45 = por %p43, %p44
    %p47 = scmp.ne.s32.totalorder %s32, %s46
    %p48 = scmp.eq.s32.totalorder %s15, 0
    %p49 = por %p47, %p48
    %s51 = sadd.s32 %s50, 1
    %p54 = scmp.eq.s32.totalorder %s9, 1
    %p55 = scmp.ne.s32.totalorder %s50, %s52
    %p56 = scmp.eq.s32.totalorder %s9, 0
    %p57 = por %p55, %p56
    %p58 = scmp.ne.s32.totalorder %s50, %s52
    %p59 = scmp.eq.s32.totalorder %s14, 1
    %p60 = por %p58, %p59
    %p61 = scmp.ne.s32.totalorder %s52, %s53
    %p62 = scmp.eq.s32.totalorder %s14, 0
    %p63 = por %p61, %p62
    %p64 = scmp.ne.s32.totalorder %s52, %s53
    %p65 = scmp.eq.s32.totalorder %s15, 1
    %p66 = por %p64, %p65
    %p68 = scmp.ne.s32.totalorder %s53, %s67
    %p69 = scmp.eq.s32.totalorder %s15, 0
    %p70 = por %p68, %p69
    %s71 = ssub.s32 %s16, %s28
    %s72 = ssub.s32 %s17, %s24
    %s73 = sor.u32 %s71, %s72
    %p74 = scmp.eq.s32.totalorder %s73, 0
    %s76 = sadd.s32 %s75, 1
    %s77 = scalar_select %p74, %s75, %s76
    %p80 = pneg %p74
    %p81 = scmp.eq.s32.totalorder %s9, 1
    %p82 = por %p80, %p81
    %p83 = scmp.ne.s32.totalorder %s75, %s78
    %p84 = scmp.eq.s32.totalorder %s9, 0
    %p85 = por %p83, %p84
    %p86 = scmp.ne.s32.totalorder %s75, %s78
    %p87 = scmp.eq.s32.totalorder %s14, 1
    %p88 = por %p86, %p87
    %p89 = scmp.ne.s32.totalorder %s78, %s79
    %p90 = scmp.eq.s32.totalorder %s14, 0
    %p91 = por %p89, %p90
    %p92 = scmp.ne.s32.totalorder %s78, %s79
    %p93 = scmp.eq.s32.totalorder %s15, 1
    %p94 = por %p92, %p93
    %p96 = scmp.ne.s32.totalorder %s79, %s95
    %p97 = scmp.eq.s32.totalorder %s15, 0
    %p98 = por %p96, %p97
    %s99 = ssub.s32 %s16, %s28
    %s100 = ssub.s32 %s17, %s24
    %s101 = sor.u32 %s99, %s100
    %p102 = scmp.eq.s32.totalorder %s101, 0
    %s104 = sadd.s32 %s103, 1
    %s105 = scalar_select %p102, %s103, %s104
    %p108 = pneg %p102
    %p109 = scmp.eq.s32.totalorder %s9, 1
    %p110 = por %p108, %p109
    %p111 = scmp.ne.s32.totalorder %s103, %s106
    %p112 = scmp.eq.s32.totalorder %s9, 0
    %p113 = por %p111, %p112
    %p114 = scmp.ne.s32.totalorder %s103, %s106
    %p115 = scmp.eq.s32.totalorder %s14, 1
    %p116 = por %p114, %p115
    %p117 = scmp.ne.s32.totalorder %s106, %s107
    %p118 = scmp.eq.s32.totalorder %s14, 0
    %p119 = por %p117, %p118
    %p120 = scmp.ne.s32.totalorder %s106, %s107
    %p121 = scmp.eq.s32.totalorder %s15, 1
    %p122 = por %p120, %p121
    %p124 = scmp.ne.s32.totalorder %s107, %s123
    %p125 = scmp.eq.s32.totalorder %s15, 0
    %p126 = por %p124, %p125
    %p127 = scmp.le.s32.totalorder 1, %s9
    %p128 = scmp.lt.s32.totalorder %s9, 3
    %p129 = pnand %p127, %p128
    %p130 = pneg %p129
    // Predicated region
    $region9: #{backbone_base_moe_forward.7} parent=5 // pred_check
      _
    $region10: #{backbone_base_moe_forward.7} parent=5 // pred_check_branch
      %132 = sbr.rel (%p129) target = $region12
    $region11: #{backbone_base_moe_forward.7} parent=5 // pred_region
      %s133 = ssub.s32 %s9, 1
      // Predicated region
      $region13: #{backbone_base_moe_forward.7} parent=11 // pred_check
        %p134 = pneg %p42
      $region14: #{backbone_base_moe_forward.7} parent=11 // pred_check_branch
        %136 = sbr.rel (%p134) target = $region16
      $region15: #{backbone_base_moe_forward.7} parent=11 // pred_region
        _
      $region16: #{backbone_base_moe_forward.7} parent=11 // pred_fallthru
        _
      // Predicated region
      $region17: #{backbone_base_moe_forward.7} parent=11 // pred_check
        %p137 = pneg %p63
      $region18: #{backbone_base_moe_forward.7} parent=11 // pred_check_branch
        %139 = sbr.rel (%p137) target = $region20
      $region19: #{backbone_base_moe_forward.7} parent=11 // pred_region
        _
      $region20: #{backbone_base_moe_forward.7} parent=11 // pred_fallthru
        _
    $region12: #{backbone_base_moe_forward.7} parent=5 // pred_fallthru
      _
    %p140 = scmp.lt.s32.totalorder %s9, 2
    // Predicated region
    $region21: #{backbone_base_moe_forward.7} parent=5 // pred_check
      %p141 = pneg %p140
    $region22: #{backbone_base_moe_forward.7} parent=5 // pred_check_branch
      %143 = sbr.rel (%p141) target = $region24
    $region23: #{backbone_base_moe_forward.7} parent=5 // pred_region
      // Predicated region
      $region25: #{backbone_base_moe_forward.7} parent=23 // pred_check
        %p144 = pneg %p85
      $region26: #{backbone_base_moe_forward.7} parent=23 // pred_check_branch
        %146 = sbr.rel (%p144) target = $region28
      $region27: #{backbone_base_moe_forward.7} parent=23 // pred_region
        %p147 = scmp.lt.s32.totalorder %s16, 1
        %s148 = scalar_select %p147, %s16, 1
        %p149 = scmp.lt.s32.totalorder %s17, 0
        %s150 = scalar_select %p149, %s17, 0
        %s151 = smul.addr %s148, 36
        %s152 = sadd.s32 %s150, %s151
        %s153 = smul.addr %s152, 4
        %s154 = scalar_lea.vmem %s2, %s153
      $region28: #{backbone_base_moe_forward.7} parent=23 // pred_fallthru
        _
    $region24: #{backbone_base_moe_forward.7} parent=5 // pred_fallthru
      _
    %p155 = scmp.le.s32.totalorder 1, %s9
    %p156 = scmp.lt.s32.totalorder %s9, 3
    %p157 = pnand %p155, %p156
    %p158 = pneg %p157
    // Predicated region
    $region29: #{backbone_base_moe_forward.7} parent=5 // pred_check
      _
    $region30: #{backbone_base_moe_forward.7} parent=5 // pred_check_branch
      %160 = sbr.rel (%p157) target = $region32
    $region31: #{backbone_base_moe_forward.7} parent=5 // pred_region
      %s161 = ssub.s32 %s9, 1
      %p162 = pneg %p42
      %p163 = pneg %p39
      %p164 = pneg %p63
      %p165 = pneg %p60
      %p166 = scmp.lt.s32.totalorder %s18, 1
      %s167 = scalar_select %p166, %s18, 1
      %p168 = scmp.lt.s32.totalorder %s19, 0
      %s169 = scalar_select %p168, %s19, 0
      %s170 = smul.addr %s167, 36
      %s171 = sadd.s32 %s169, %s170
      %s172 = smul.addr %s171, 4
      %s173 = scalar_lea.vmem %s2, %s172
      %p174 = pneg %p91
      %p175 = pneg %p88
      %p176 = pneg %p119
      %p177 = pneg %p116
      %p178 = scmp.lt.s32.totalorder %s18, 1
      %s179 = scalar_select %p178, %s18, 1
      %p180 = scmp.lt.s32.totalorder %s19, 0
      %s181 = scalar_select %p180, %s19, 0
      %s182 = smul.addr %s179, 8
      %s183 = sadd.s32 %s181, %s182
      %s184 = smul.addr %s183, 4
      %s185 = scalar_lea.vmem %s3, %s184
      %p186 = scmp.lt.s32.totalorder %s18, 1
      %s187 = scalar_select %p186, %s18, 1
      %p188 = scmp.lt.s32.totalorder %s19, 0
      %s189 = scalar_select %p188, %s19, 0
      %s190 = smul.addr %s187, 36
      %s191 = sadd.s32 %s189, %s190
      %s192 = smul.addr %s191, 4
      %s193 = scalar_lea.vmem %s2, %s192
      %p194 = scmp.lt.s32.totalorder %s18, 1
      %s195 = scalar_select %p194, %s18, 1
      %p196 = scmp.lt.s32.totalorder %s19, 0
      %s197 = scalar_select %p196, %s19, 0
      %s198 = smul.addr %s195, 8
      %s199 = sadd.s32 %s197, %s198
      %s200 = smul.addr %s199, 4
      %s201 = scalar_lea.vmem %s3, %s200
      %v203 = vld [vmem:[%s0] sm:$0xff]
      %v204 = vld [vmem:[%s0 + $0x8] sm:$0xf]
      %v205 = vld [vmem:[%s0 + $0xc] sm:$0xff]
      %v206 = vld [vmem:[%s0 + $0x14] sm:$0xf]
      %v207 = vld [vmem:[%s0 + $0x18] sm:$0xff]
      %v208 = vld [vmem:[%s0 + $0x20] sm:$0xf]
      %v209 = vld [vmem:[%s0 + $0x24] sm:$0xff]
      %v210 = vld [vmem:[%s0 + $0x2c] sm:$0xf]
      %v211 = vld [vmem:[%s0 + $0x30] sm:$0xff]
      %v212 = vld [vmem:[%s0 + $0x38] sm:$0xf]
      %v213 = vld [vmem:[%s0 + $0x3c] sm:$0xff]
      %v214 = vld [vmem:[%s0 + $0x44] sm:$0xf]
      %v215 = vld [vmem:[%s0 + $0x48] sm:$0xff]
      %v216 = vld [vmem:[%s0 + $0x50] sm:$0xf]
      %v217 = vld [vmem:[%s0 + $0x54] sm:$0xff]
      %v218 = vld [vmem:[%s0 + $0x5c] sm:$0xf]
      %v219 = vld [vmem:[%s193] sm:$0xf]
      %v220 = vld [vmem:[%s193 + $0x4] sm:$0xf]
      %v221 = vld [vmem:[%s193 + $0x8] sm:$0xf]
      %v222 = vld [vmem:[%s193 + $0xc] sm:$0xf]
      %v223 = vld [vmem:[%s193 + $0x10] sm:$0xf]
      %v224 = vld [vmem:[%s193 + $0x14] sm:$0xf]
      %v225 = vld [vmem:[%s193 + $0x18] sm:$0xf]
      %v226 = vld [vmem:[%s193 + $0x1c] sm:$0xf]
      %v227 = vld [vmem:[%s193 + $0x20] sm:$0xf]
      %v228 = vld [vmem:[%s193 + $0x24] sm:$0xf]
      %v229 = vld [vmem:[%s193 + $0x28] sm:$0xf]
      %v230 = vld [vmem:[%s193 + $0x2c] sm:$0xf]
      %v231 = vld [vmem:[%s193 + $0x30] sm:$0xf]
      %v232 = vld [vmem:[%s193 + $0x34] sm:$0xf]
      %v233 = vld [vmem:[%s193 + $0x38] sm:$0xf]
      %v234 = vld [vmem:[%s193 + $0x3c] sm:$0xf]
      %v235 = vld [vmem:[%s193 + $0x40] sm:$0xf]
      %v236 = vld [vmem:[%s193 + $0x44] sm:$0xf]
      %v237 = vld [vmem:[%s193 + $0x48] sm:$0xf]
      %v238 = vld [vmem:[%s193 + $0x4c] sm:$0xf]
      %v239 = vld [vmem:[%s193 + $0x50] sm:$0xf]
      %v240 = vld [vmem:[%s193 + $0x54] sm:$0xf]
      %v241 = vld [vmem:[%s193 + $0x58] sm:$0xf]
      %v242 = vld [vmem:[%s193 + $0x5c] sm:$0xf]
      %v243 = vld [vmem:[%s193 + $0x60] sm:$0xf]
      %v244 = vld [vmem:[%s193 + $0x64] sm:$0xf]
      %v245 = vld [vmem:[%s193 + $0x68] sm:$0xf]
      %v246 = vld [vmem:[%s193 + $0x6c] sm:$0xf]
      %v247 = vld [vmem:[%s193 + $0x70] sm:$0xf]
      %v248 = vld [vmem:[%s193 + $0x74] sm:$0xf]
      %v249 = vld [vmem:[%s193 + $0x78] sm:$0xf]
      %v250 = vld [vmem:[%s193 + $0x7c] sm:$0xf]
      %v251 = vld [vmem:[%s193 + $0x80] sm:$0xf]
      %v252 = vld [vmem:[%s193 + $0x84] sm:$0xf]
      %v253 = vld [vmem:[%s193 + $0x88] sm:$0xf]
      %v254 = vld [vmem:[%s193 + $0x8c] sm:$0xf]
      %v255 = vld [vmem:[%s1] sm:$0xff]
      %v256 = vld [vmem:[%s1 + $0x8] sm:$0xff]
      %v257 = vld [vmem:[%s1 + $0x10] sm:$0xff]
      %v258 = vld [vmem:[%s1 + $0x18] sm:$0xff]
      %v259 = vld [vmem:[%s1 + $0x20] sm:$0xff]
      %v260 = vld [vmem:[%s1 + $0x28] sm:$0xff]
      %v261 = vld [vmem:[%s1 + $0x30] sm:$0xff]
      %v262 = vld [vmem:[%s1 + $0x38] sm:$0xff]
      %264 = vset.pattern.permute.xlu0 0
      %265 = vperm.xlu0 %264, %v255
      %v266 = vpop.permute.xlu0 %265
      %269 = vset.pattern.permute.xlu0 0
      %270 = vperm.xlu0 %269, %v256
      %v271 = vpop.permute.xlu0 %270
      %274 = vset.pattern.permute.xlu0 0
      %275 = vperm.xlu0 %274, %v257
      %v276 = vpop.permute.xlu0 %275
      %279 = vset.pattern.permute.xlu0 0
      %280 = vperm.xlu0 %279, %v258
      %v281 = vpop.permute.xlu0 %280
      %284 = vset.pattern.permute.xlu0 0
      %285 = vperm.xlu0 %284, %v259
      %v286 = vpop.permute.xlu0 %285
      %289 = vset.pattern.permute.xlu0 0
      %290 = vperm.xlu0 %289, %v260
      %v291 = vpop.permute.xlu0 %290
      %294 = vset.pattern.permute.xlu0 0
      %295 = vperm.xlu0 %294, %v261
      %v296 = vpop.permute.xlu0 %295
      %299 = vset.pattern.permute.xlu0 0
      %300 = vperm.xlu0 %299, %v262
      %v301 = vpop.permute.xlu0 %300
      %v319 = vunpack.c.l.b16 %v203
      %v320 = vunpack.c.h.b16 %v203
      %v321 = vunpack.c.l.b16 %v204
      %v322 = vunpack.c.l.b16 %v205
      %v323 = vunpack.c.h.b16 %v205
      %v324 = vunpack.c.l.b16 %v206
      %v325 = vunpack.c.l.b16 %v207
      %v326 = vunpack.c.h.b16 %v207
      %v327 = vunpack.c.l.b16 %v208
      %v328 = vunpack.c.l.b16 %v209
      %v329 = vunpack.c.h.b16 %v209
      %v330 = vunpack.c.l.b16 %v210
      %v331 = vunpack.c.l.b16 %v211
      %v332 = vunpack.c.h.b16 %v211
      %v333 = vunpack.c.l.b16 %v212
      %v334 = vunpack.c.l.b16 %v213
      %v335 = vunpack.c.h.b16 %v213
      %v336 = vunpack.c.l.b16 %v214
      %v337 = vunpack.c.l.b16 %v215
      %v338 = vunpack.c.h.b16 %v215
      %v339 = vunpack.c.l.b16 %v216
      %v340 = vunpack.c.l.b16 %v217
      %v341 = vunpack.c.h.b16 %v217
      %v342 = vunpack.c.l.b16 %v218
      %v343 = vpack.c.b16 %v322, %v319
      %v344 = vpack.c.b16 %v323, %v320
      %v345 = vpack.c.b16 %v324, %v321
      %v346 = vpack.c.b16 %v328, %v325
      %v347 = vpack.c.b16 %v329, %v326
      %v348 = vpack.c.b16 %v330, %v327
      %v349 = vpack.c.b16 %v334, %v331
      %v350 = vpack.c.b16 %v335, %v332
      %v351 = vpack.c.b16 %v336, %v333
      %v352 = vpack.c.b16 %v340, %v337
      %v353 = vpack.c.b16 %v341, %v338
      %v354 = vpack.c.b16 %v342, %v339
      %v399 = vunpack.c.l.b16 %v219
      %v400 = vunpack.c.l.b16 %v220
      %v401 = vunpack.c.l.b16 %v221
      %v402 = vunpack.c.l.b16 %v222
      %v403 = vunpack.c.l.b16 %v223
      %v404 = vunpack.c.l.b16 %v224
      %v405 = vunpack.c.l.b16 %v225
      %v406 = vunpack.c.l.b16 %v226
      %v407 = vunpack.c.l.b16 %v227
      %v408 = vunpack.c.l.b16 %v228
      %v409 = vunpack.c.l.b16 %v229
      %v410 = vunpack.c.l.b16 %v230
      %v411 = vunpack.c.l.b16 %v231
      %v412 = vunpack.c.l.b16 %v232
      %v413 = vunpack.c.l.b16 %v233
      %v414 = vunpack.c.l.b16 %v234
      %v415 = vunpack.c.l.b16 %v235
      %v416 = vunpack.c.l.b16 %v236
      %v417 = vunpack.c.l.b16 %v237
      %v418 = vunpack.c.l.b16 %v238
      %v419 = vunpack.c.l.b16 %v239
      %v420 = vunpack.c.l.b16 %v240
      %v421 = vunpack.c.l.b16 %v241
      %v422 = vunpack.c.l.b16 %v242
      %v423 = vunpack.c.l.b16 %v243
      %v424 = vunpack.c.l.b16 %v244
      %v425 = vunpack.c.l.b16 %v245
      %v426 = vunpack.c.l.b16 %v246
      %v427 = vunpack.c.l.b16 %v247
      %v428 = vunpack.c.l.b16 %v248
      %v429 = vunpack.c.l.b16 %v249
      %v430 = vunpack.c.l.b16 %v250
      %v431 = vunpack.c.l.b16 %v251
      %v432 = vunpack.c.l.b16 %v252
      %v433 = vunpack.c.l.b16 %v253
      %v434 = vunpack.c.l.b16 %v254
      %v435 = vpack.c.b16 %v400, %v399
      %v436 = vpack.c.b16 %v402, %v401
      %v437 = vpack.c.b16 %v404, %v403
      %v438 = vpack.c.b16 %v406, %v405
      %v439 = vpack.c.b16 %v408, %v407
      %v440 = vpack.c.b16 %v410, %v409
      %v441 = vpack.c.b16 %v412, %v411
      %v442 = vpack.c.b16 %v414, %v413
      %v443 = vpack.c.b16 %v416, %v415
      %v444 = vpack.c.b16 %v418, %v417
      %v445 = vpack.c.b16 %v420, %v419
      %v446 = vpack.c.b16 %v422, %v421
      %v447 = vpack.c.b16 %v424, %v423
      %v448 = vpack.c.b16 %v426, %v425
      %v449 = vpack.c.b16 %v428, %v427
      %v450 = vpack.c.b16 %v430, %v429
      %v451 = vpack.c.b16 %v432, %v431
      %v452 = vpack.c.b16 %v434, %v433
      %vm471 = vcmask 261120
      %v473 = vsel %vm471, %v345, 0
      %v476 = vsel %vm471, %v348, 0
      %v479 = vsel %vm471, %v351, 0
      %v482 = vsel %vm471, %v354, 0
      %484 = vmatpush.bf16.msra.mxu0 %v442
      %485 = vmatpush.bf16.msra.mxu0 %v441
      %486 = vmatpush.bf16.msra.mxu0 %v440
      %487 = vmatpush.bf16.msra.mxu0 %v439
      %488 = vmatpush.bf16.msra.mxu0 %v438
      %489 = vmatpush.bf16.msra.mxu0 %v437
      %490 = vmatpush.bf16.msra.mxu0 %v436
      %491 = vmatpush.bf16.msra.mxu0 %v435
      %492 = vmatmul.bf16.gmra.mxu0 %v343
      %v493 = vpop.f32.mrf.mxu0
      %v494 = vadd.f32 %v266, %v493
      %v495 = vpop.f32.mrf.mxu0
      %v496 = vadd.f32 %v271, %v495
      %497 = vmatmul.bf16.gmra.mxu0 %v346
      %v498 = vpop.f32.mrf.mxu0
      %v499 = vadd.f32 %v276, %v498
      %v500 = vpop.f32.mrf.mxu0
      %v501 = vadd.f32 %v281, %v500
      %502 = vmatmul.bf16.gmra.mxu0 %v349
      %v503 = vpop.f32.mrf.mxu0
      %v504 = vadd.f32 %v286, %v503
      %v505 = vpop.f32.mrf.mxu0
      %v506 = vadd.f32 %v291, %v505
      %507 = vmatmul.bf16.gmra.mxu0 %v352
      %v508 = vpop.f32.mrf.mxu0
      %v509 = vadd.f32 %v296, %v508
      %v510 = vpop.f32.mrf.mxu0
      %v511 = vadd.f32 %v301, %v510
      %512 = vdwg.mxu0
      %513 = vmatpush.bf16.msra.mxu0 %v450
      %514 = vmatpush.bf16.msra.mxu0 %v449
      %515 = vmatpush.bf16.msra.mxu0 %v448
      %516 = vmatpush.bf16.msra.mxu0 %v447
      %517 = vmatpush.bf16.msra.mxu0 %v446
      %518 = vmatpush.bf16.msra.mxu0 %v445
      %519 = vmatpush.bf16.msra.mxu0 %v444
      %520 = vmatpush.bf16.msra.mxu0 %v443
      %521 = vmatmul.bf16.gmra.mxu0 %v344
      %v522 = vpop.f32.mrf.mxu0
      %v523 = vadd.f32 %v494, %v522
      %v524 = vpop.f32.mrf.mxu0
      %v525 = vadd.f32 %v496, %v524
      %526 = vmatmul.bf16.gmra.mxu0 %v347
      %v527 = vpop.f32.mrf.mxu0
      %v528 = vadd.f32 %v499, %v527
      %v529 = vpop.f32.mrf.mxu0
      %v530 = vadd.f32 %v501, %v529
      %531 = vmatmul.bf16.gmra.mxu0 %v350
      %v532 = vpop.f32.mrf.mxu0
      %v533 = vadd.f32 %v504, %v532
      %v534 = vpop.f32.mrf.mxu0
      %v535 = vadd.f32 %v506, %v534
      %536 = vmatmul.bf16.gmra.mxu0 %v353
      %v537 = vpop.f32.mrf.mxu0
      %v538 = vadd.f32 %v509, %v537
      %v539 = vpop.f32.mrf.mxu0
      %v540 = vadd.f32 %v511, %v539
      %541 = vdwg.mxu0
      %542 = vmatpush.bf16.msra.mxu0 0
      %543 = vmatpush.bf16.msra.mxu0 0
      %544 = vmatpush.bf16.msra.mxu0 0
      %545 = vmatpush.bf16.msra.mxu0 0
      %546 = vmatpush.bf16.msra.mxu0 0
      %547 = vmatpush.bf16.msra.mxu0 0
      %548 = vmatpush.bf16.msra.mxu0 %v452
      %549 = vmatpush.bf16.msra.mxu0 %v451
      %550 = vmatmul.bf16.gmra.mxu0 %v473
      %v551 = vpop.f32.mrf.mxu0
      %v552 = vadd.f32 %v523, %v551
      %v553 = vpop.f32.mrf.mxu0
      %v554 = vadd.f32 %v525, %v553
      %555 = vmatmul.bf16.gmra.mxu0 %v476
      %v556 = vpop.f32.mrf.mxu0
      %v557 = vadd.f32 %v528, %v556
      %v558 = vpop.f32.mrf.mxu0
      %v559 = vadd.f32 %v530, %v558
      %560 = vmatmul.bf16.gmra.mxu0 %v479
      %v561 = vpop.f32.mrf.mxu0
      %v562 = vadd.f32 %v533, %v561
      %v563 = vpop.f32.mrf.mxu0
      %v564 = vadd.f32 %v535, %v563
      %565 = vmatmul.bf16.gmra.mxu0 %v482
      %v566 = vpop.f32.mrf.mxu0
      %v567 = vadd.f32 %v538, %v566
      %v568 = vpop.f32.mrf.mxu0
      %v569 = vadd.f32 %v540, %v568
      %570 = vdwg.mxu0
      %v571 = vmax.f32 %v552, 0.0
      %v572 = vmax.f32 %v554, 0.0
      %v573 = vmax.f32 %v557, 0.0
      %v574 = vmax.f32 %v559, 0.0
      %v575 = vmax.f32 %v562, 0.0
      %v576 = vmax.f32 %v564, 0.0
      %v577 = vmax.f32 %v567, 0.0
      %v578 = vmax.f32 %v569, 0.0
      %v579 = vpack.c.bf16 %v571, %v571
      %v580 = vpack.c.bf16 %v572, %v572
      %v581 = vpack.c.bf16 %v573, %v573
      %v582 = vpack.c.bf16 %v574, %v574
      %v583 = vpack.c.bf16 %v575, %v575
      %v584 = vpack.c.bf16 %v576, %v576
      %v585 = vpack.c.bf16 %v577, %v577
      %v586 = vpack.c.bf16 %v578, %v578
      %vm587 = vcmask 27648
      %588 = vst.msk [vmem:[%s201] sm:$0xf] %vm587, %v579
      %589 = vst.msk [vmem:[%s201 + $0x4] sm:$0xf] %vm587, %v580
      %590 = vst.msk [vmem:[%s201 + $0x8] sm:$0xf] %vm587, %v581
      %591 = vst.msk [vmem:[%s201 + $0xc] sm:$0xf] %vm587, %v582
      %592 = vst.msk [vmem:[%s201 + $0x10] sm:$0xf] %vm587, %v583
      %593 = vst.msk [vmem:[%s201 + $0x14] sm:$0xf] %vm587, %v584
      %594 = vst.msk [vmem:[%s201 + $0x18] sm:$0xf] %vm587, %v585
      %595 = vst.msk [vmem:[%s201 + $0x1c] sm:$0xf] %vm587, %v586
      %p596 = scmp.lt.s32.totalorder %s18, 1
      %s597 = scalar_select %p596, %s18, 1
      %p598 = scmp.lt.s32.totalorder %s19, 0
      %s599 = scalar_select %p598, %s19, 0
      %s600 = smul.addr %s597, 8
      %s601 = sadd.s32 %s599, %s600
      %s602 = smul.addr %s601, 4
      %s603 = scalar_lea.vmem %s3, %s602
      // Predicated region
      $region33: #{backbone_base_moe_forward.7} parent=31 // pred_check
        %p604 = pneg %p116
      $region34: #{backbone_base_moe_forward.7} parent=31 // pred_check_branch
        %606 = sbr.rel (%p604) target = $region36
      $region35: #{backbone_base_moe_forward.7} parent=31 // pred_region
        _
      $region36: #{backbone_base_moe_forward.7} parent=31 // pred_fallthru
        _
    $region32: #{backbone_base_moe_forward.7} parent=5 // pred_fallthru
      _
    %p607 = scmp.le.s32.totalorder 2, %s9
    // Predicated region
    $region37: #{backbone_base_moe_forward.7} parent=5 // pred_check
      %p608 = pneg %p607
    $region38: #{backbone_base_moe_forward.7} parent=5 // pred_check_branch
      %610 = sbr.rel (%p608) target = $region40
    $region39: #{backbone_base_moe_forward.7} parent=5 // pred_region
      %s611 = ssub.s32 %s9, 2
      // Predicated region
      $region41: #{backbone_base_moe_forward.7} parent=39 // pred_check
        %p612 = pneg %p122
      $region42: #{backbone_base_moe_forward.7} parent=39 // pred_check_branch
        %614 = sbr.rel (%p612) target = $region44
      $region43: #{backbone_base_moe_forward.7} parent=39 // pred_region
        %p615 = scmp.lt.s32.totalorder %s20, 1
        %s616 = scalar_select %p615, %s20, 1
        %p617 = scmp.lt.s32.totalorder %s21, 0
        %s618 = scalar_select %p617, %s21, 0
        %s619 = smul.addr %s616, 8
        %s620 = sadd.s32 %s618, %s619
        %s621 = smul.addr %s620, 4
        %s622 = scalar_lea.vmem %s3, %s621
      $region44: #{backbone_base_moe_forward.7} parent=39 // pred_fallthru
        _
    $region40: #{backbone_base_moe_forward.7} parent=5 // pred_fallthru
      _
  $region6: #{backbone_base_moe_forward.7} parent=0 // loop_footer
    %s13 = sadd.s32 1, %s9
  $region7: #{backbone_base_moe_forward.7} parent=0 // loop_footer_branch
    %8 = sbr.rel target = $region3
  $region8: #{backbone_base_moe_forward.7} parent=0 // loop_exit
    _

</llo_original>
